<compile_context>
chip_gen: v6e
topology: v6e:2x2x1
jax: 0.10.0
libtpu: 0.0.40
codegen_flags: <defaults>
</compile_context>

<pallas_src>
import functools

import jax
import jax.numpy as jnp
import numpy as np
from jax import lax
from jax.experimental import pallas as pl
from jax.experimental.pallas import tpu as pltpu


def _ea_kernel(x_ctr_ref, x_top_ref, x_bot_ref, w_ref, b_ref, o_ref, *,
               use_bf16_matmul):
    # x_ctr_ref: (1, TH, W, C) center rows of this tile
    # x_top_ref: (1, 1,  W, C) row just above the tile (clamped; masked at top edge)
    # x_bot_ref: (1, 1,  W, C) row just below the tile (clamped; masked at bottom edge)
    # w_ref    : (9*C, C)      conv weight, HWIO reshaped -> (ky, kx, ci)-major rows
    # b_ref    : (1, C)        conv bias
    # o_ref    : (1, TH, W, C) output tile
    _, TH, W, C = x_ctr_ref.shape
    f32 = jnp.float32
    i = pl.program_id(1)
    n_h = pl.num_programs(1)

    ctr = x_ctr_ref[0].astype(f32)                                 # (TH, W, C)
    top = x_top_ref[0].astype(f32) * (i > 0).astype(f32)           # (1, W, C)
    bot = x_bot_ref[0].astype(f32) * (i < n_h - 1).astype(f32)     # (1, W, C)

    # Vertical halo: concat along the (untiled) leading axis is cheap.
    xr = jnp.concatenate([top, ctr, bot], axis=0)                  # (TH+2, W, C)

    # Horizontal halo: two W-shifted copies, built once and reused by all ky.
    # TODO(synk): pltpu.roll(xr, +-1, axis=1) + an iota edge mask would push
    # these shifts onto the XLU (overlapping MXU/VPU); slice+concat is kept as
    # the known-good lowering.
    zcol = jnp.zeros((TH + 2, 1, C), f32)
    left = jnp.concatenate([zcol, xr[:, :W - 1, :]], axis=1)       # value@w = x[.., w-1]
    right = jnp.concatenate([xr[:, 1:, :], zcol], axis=1)          # value@w = x[.., w+1]

    # One lane-concat band [left | center | right]: (TH+2, W, 3C).  The 3x3 conv
    # is 3 accumulating MXU matmuls (K = 3C) against row-slices of w_ref, taking
    # band rows at offsets 0 / W / 2W for ky = 0, 1, 2.
    band = jnp.concatenate([left, xr, right], axis=-1)
    band_flat = band.reshape((TH + 2) * W, 3 * C)
    # NOTE: the ky row offsets are static multiples of W; keeping W a multiple
    # of 8 (it is 16 here) makes these slices zero-cost sublane views.

    M = TH * W
    mm_dtype = jnp.bfloat16 if use_bf16_matmul else f32
    band_mm = band_flat.astype(mm_dtype)
    w = w_ref[...].astype(mm_dtype)                                # (9C, C)

    # Bias folded into the accumulator init: the (1, C) broadcast-add fuses with
    # the first accumulation instead of being a separate full-tile pass.
    conv = b_ref[...].astype(f32)                                  # (1, C)
    for ky in range(3):
        conv = conv + jnp.dot(
            band_mm[ky * W: ky * W + M, :],
            w[ky * 3 * C: (ky + 1) * 3 * C, :],
            preferred_element_type=jnp.float32)                    # (M, C)

    attn = jax.nn.sigmoid(conv)
    y = ctr.reshape(M, C) * attn
    # TODO(synk): for C < 128 a lane-dense (W*C) store needs a sublane->lane
    # relayout that costs more than the masked-vst path; output stays NHWC.
    o_ref[0] = y.reshape(TH, W, C).astype(o_ref.dtype)


def _vmem_capacity_bytes():
    """Physical VMEM per TensorCore; conservative v7x value if unqueryable."""
    try:
        return int(pltpu.get_tpu_info().vmem_capacity_bytes)
    except Exception:
        return 64 * 1024 * 1024


def _pick_tile_rows(N, H, W, C, in_itemsize, budget_bytes):
    """Tile height from a VMEM budget.

    In-kernel temporaries (xr, left/right, 3C band, accumulator, sigmoid,
    product) are f32 regardless of input dtype (~12x the center-tile f32
    footprint); the double-buffered in/out pipeline blocks scale with the
    input itemsize (~4x).
    """
    per_row = (12 * 4 + 4 * in_itemsize) * W * C
    max_rows = max(1, int(budget_bytes) // per_row)
    if N == 1:
        # v7x megacore: keep >= 2 H-tiles so both TensorCores get work.
        max_rows = min(max_rows, max(1, pl.cdiv(H, 2)))
    max_rows = min(max_rows, H)
    # Prefer an exact divisor of H near max_rows (no padding needed)...
    for d in range(max_rows, 0, -1):
        if H % d == 0 and 2 * d > max_rows:
            return d
    # ...otherwise use max_rows and let the wrapper pad H (avoids the 1-row
    # tile cliff for prime/odd H).
    return max_rows


@functools.partial(
    jax.jit,
    static_argnames=("tile_rows", "use_bf16_matmul", "vmem_limit_bytes"))
def _ea_nhwc_impl(x_nhwc, weight_hwio, bias, *, tile_rows, use_bf16_matmul,
                  vmem_limit_bytes):
    N, H, W, C = x_nhwc.shape
    w2d = weight_hwio.reshape(9 * C, C)        # (ky, kx, ci)-major rows
    bias2d = bias.reshape(1, C)

    th = max(1, min(int(tile_rows), H))
    n_h = pl.cdiv(H, th)
    h_pad = n_h * th
    x_in = x_nhwc
    if h_pad != H:
        # Zero rows below the image: exactly the "same" padding the conv wants;
        # the extra output rows are sliced off below.
        x_in = jnp.pad(x_nhwc, ((0, 0), (0, h_pad - H), (0, 0), (0, 0)))

    kernel = functools.partial(_ea_kernel, use_bf16_matmul=use_bf16_matmul)

    out = pl.pallas_call(
        kernel,
        out_shape=jax.ShapeDtypeStruct((N, h_pad, W, C), x_nhwc.dtype),
        grid_spec=pltpu.PrefetchScalarGridSpec(
            num_scalar_prefetch=0,
            grid=(N, n_h),
            in_specs=[
                # center rows of the tile
                pl.BlockSpec((1, th, W, C), lambda b, i: (b, i, 0, 0)),
                # one halo row above (block height 1 => block index == row index)
                pl.BlockSpec((1, 1, W, C),
                             lambda b, i: (b, jnp.maximum(i * th - 1, 0), 0, 0)),
                # one halo row below
                pl.BlockSpec((1, 1, W, C),
                             lambda b, i: (b, jnp.minimum((i + 1) * th, h_pad - 1),
                                           0, 0)),
                pl.BlockSpec((9 * C, C), lambda b, i: (0, 0)),
                pl.BlockSpec((1, C), lambda b, i: (0, 0)),
            ],
            out_specs=pl.BlockSpec((1, th, W, C), lambda b, i: (b, i, 0, 0)),
        ),
        compiler_params=pltpu.CompilerParams(
            dimension_semantics=("parallel", "parallel"),
            vmem_limit_bytes=vmem_limit_bytes,
        ),
    )(x_in, x_in, x_in, w2d, bias2d)

    if h_pad != H:
        out = out[:, :H]
    return out


def ea_forward_nhwc(x_nhwc, weight_hwio, bias, tile_rows=None,
                    use_bf16_matmul=None):
    """EA forward on an NHWC tensor (no layout transposes; preferred entry)."""
    N, H, W, C = x_nhwc.shape
    if use_bf16_matmul is None:
        use_bf16_matmul = (x_nhwc.dtype == jnp.bfloat16)

    vmem_cap = _vmem_capacity_bytes()
    if vmem_cap >= 100 * 1024 * 1024:          # v5e / v6e: 128 MiB physical
        vmem_limit = 96 * 1024 * 1024
    else:                                      # v7x: 64 MiB physical (or unknown)
        vmem_limit = 48 * 1024 * 1024
    if tile_rows is None:
        tile_rows = _pick_tile_rows(N, H, W, C,
                                    jnp.dtype(x_nhwc.dtype).itemsize,
                                    vmem_limit // 2)
    return _ea_nhwc_impl(x_nhwc, weight_hwio, bias,
                         tile_rows=int(tile_rows),
                         use_bf16_matmul=bool(use_bf16_matmul),
                         vmem_limit_bytes=int(vmem_limit))


def ea_forward(x_nchw, weight_hwio, bias, tile_rows=None, use_bf16_matmul=None):
    """NCHW interface matching the PyTorch module.

    TODO(synk): in an NHWC end-to-end model call ea_forward_nhwc directly; the
    two transposes here each add a full HBM read+write of x (~3x the minimum
    traffic for this HBM-bound op) and only exist to match the NCHW interface.
    """
    x_nhwc = jnp.transpose(x_nchw, (0, 2, 3, 1))
    out_nhwc = ea_forward_nhwc(x_nhwc, weight_hwio, bias, tile_rows,
                               use_bf16_matmul)
    return jnp.transpose(out_nhwc, (0, 3, 1, 2))


def _reference(x_nchw, weight_hwio, bias):
    # Pure-JAX reference: standard conv (NCHW, OIHW) + sigmoid + elementwise mul.
    w_oihw = jnp.transpose(weight_hwio, (3, 2, 0, 1))
    conv = lax.conv_general_dilated(
        x_nchw.astype(jnp.float32),
        w_oihw.astype(jnp.float32),
        window_strides=(1, 1),
        padding=((1, 1), (1, 1)),
        dimension_numbers=("NCHW", "OIHW", "NCHW"),
    ) + bias.astype(jnp.float32).reshape(1, -1, 1, 1)
    return x_nchw * jax.nn.sigmoid(conv).astype(x_nchw.dtype)


if __name__ == "__main__":
    key = jax.random.PRNGKey(0)
    k_x, k_w, k_b = jax.random.split(key, 3)

    N, C, H, W = 2, 4, 16, 16
    x = jax.random.normal(k_x, (N, C, H, W), dtype=jnp.float32)

    # Conv2d(dim, dim, 3) parameters, deterministic synthetic init:
    # trunc_normal_(std=0.02) weight (HWIO); small uniform bias (as in nn.Conv2d).
    weight_hwio = 0.02 * jax.random.truncated_normal(
        k_w, -2.0, 2.0, (3, 3, C, C), dtype=jnp.float32
    )
    fan_in = C * 3 * 3
    bound = 1.0 / np.sqrt(fan_in)
    bias = jax.random.uniform(
        k_b, (C,), minval=-bound, maxval=bound, dtype=jnp.float32
    )

    ref = _reference(x, weight_hwio, bias)

    # Multi-tile path (2 H-tiles of 8 rows) — exercises halo fetch + edge masking.
    out_tiled = ea_forward(x, weight_hwio, bias, tile_rows=8)
    jax.block_until_ready(out_tiled)
    np.testing.assert_allclose(np.asarray(out_tiled), np.asarray(ref),
                               rtol=1e-5, atol=1e-5)

    # Non-dividing tile height (5 rows on H=16) — exercises the pad-H path.
    out_padded = ea_forward(x, weight_hwio, bias, tile_rows=5)
    jax.block_until_ready(out_padded)
    np.testing.assert_allclose(np.asarray(out_padded), np.asarray(ref),
                               rtol=1e-5, atol=1e-5)

    # Auto-selected tile size (generation-aware VMEM budget).
    out_auto = ea_forward(x, weight_hwio, bias)
    jax.block_until_ready(out_auto)
    np.testing.assert_allclose(np.asarray(out_auto), np.asarray(ref),
                               rtol=1e-5, atol=1e-5)

    print("KERNEL_OK")
</pallas_src>

<mosaic_0001>
module attributes {stable_mosaic.version = 11 : i64} {
  func.func @_ea_kernel(%arg0: i32, %arg1: i32, %arg2: memref<1x8x16x4xf32, #tpu.memory_space<vmem>>, %arg3: memref<1x1x16x4xf32, #tpu.memory_space<vmem>>, %arg4: memref<1x1x16x4xf32, #tpu.memory_space<vmem>>, %arg5: memref<36x4xf32, #tpu.memory_space<vmem>>, %arg6: memref<1x4xf32, #tpu.memory_space<vmem>>, %arg7: memref<1x8x16x4xf32, #tpu.memory_space<vmem>>) attributes {dimension_semantics = [#tpu.dimension_semantics<parallel>, #tpu.dimension_semantics<parallel>], iteration_bounds = array<i64: 2, 2>, scalar_prefetch = 0 : i64, scratch_operands = 0 : i64, tpu.core_type = #tpu.core_type<tc>, window_params = [{transform_indices = @transform_0, window_bounds = array<i64: 1, 8, 16, 4>}, {transform_indices = @transform_1, window_bounds = array<i64: 1, 1, 16, 4>}, {transform_indices = @transform_2, window_bounds = array<i64: 1, 1, 16, 4>}, {pipeline_mode = #tpu.pipeline_mode<synchronous>, transform_indices = @transform_3, window_bounds = array<i64: 36, 4>}, {pipeline_mode = #tpu.pipeline_mode<synchronous>, transform_indices = @transform_4, window_bounds = array<i64: 1, 4>}, {transform_indices = @transform_5, window_bounds = array<i64: 1, 8, 16, 4>}]} {
    %c0 = arith.constant 0 : index
    %c0_0 = arith.constant 0 : index
    %c0_1 = arith.constant 0 : index
    %c0_2 = arith.constant 0 : index
    %0 = vector.load %arg2[%c0, %c0_0, %c0_1, %c0_2] : memref<1x8x16x4xf32, #tpu.memory_space<vmem>>, vector<1x8x16x4xf32>
    %1 = vector.shape_cast %0 : vector<1x8x16x4xf32> to vector<8x16x4xf32>
    %c0_3 = arith.constant 0 : index
    %c0_4 = arith.constant 0 : index
    %c0_5 = arith.constant 0 : index
    %c0_6 = arith.constant 0 : index
    %2 = vector.load %arg3[%c0_3, %c0_4, %c0_5, %c0_6] : memref<1x1x16x4xf32, #tpu.memory_space<vmem>>, vector<1x1x16x4xf32>
    %3 = vector.shape_cast %2 : vector<1x1x16x4xf32> to vector<1x16x4xf32>
    %c0_i32 = arith.constant 0 : i32
    %4 = arith.cmpi sgt, %arg1, %c0_i32 : i32
    %5 = arith.extui %4 : i1 to i32
    %6 = arith.sitofp %5 : i32 to f32
    %7 = vector.broadcast %6 : f32 to vector<1x16x4xf32>
    %8 = arith.mulf %3, %7 : vector<1x16x4xf32>
    %c0_7 = arith.constant 0 : index
    %c0_8 = arith.constant 0 : index
    %c0_9 = arith.constant 0 : index
    %c0_10 = arith.constant 0 : index
    %9 = vector.load %arg4[%c0_7, %c0_8, %c0_9, %c0_10] : memref<1x1x16x4xf32, #tpu.memory_space<vmem>>, vector<1x1x16x4xf32>
    %10 = vector.shape_cast %9 : vector<1x1x16x4xf32> to vector<1x16x4xf32>
    %c1_i32 = arith.constant 1 : i32
    %11 = arith.cmpi slt, %arg1, %c1_i32 : i32
    %12 = arith.extui %11 : i1 to i32
    %13 = arith.sitofp %12 : i32 to f32
    %14 = vector.broadcast %13 : f32 to vector<1x16x4xf32>
    %15 = arith.mulf %10, %14 : vector<1x16x4xf32>
    %16 = tpu.concatenate %8, %1, %15 in 0 : vector<1x16x4xf32>, vector<8x16x4xf32>, vector<1x16x4xf32> -> vector<10x16x4xf32>
    %cst = arith.constant 0.000000e+00 : f32
    %17 = vector.broadcast %cst : f32 to vector<10x1x4xf32>
    %18 = vector.extract_strided_slice %16 {offsets = [0, 0, 0], sizes = [10, 15, 4], strides = [1, 1, 1]} : vector<10x16x4xf32> to vector<10x15x4xf32>
    %19 = tpu.concatenate %17, %18 in 1 : vector<10x1x4xf32>, vector<10x15x4xf32> -> vector<10x16x4xf32>
    %20 = vector.extract_strided_slice %16 {offsets = [0, 1, 0], sizes = [10, 15, 4], strides = [1, 1, 1]} : vector<10x16x4xf32> to vector<10x15x4xf32>
    %21 = tpu.concatenate %20, %17 in 1 : vector<10x15x4xf32>, vector<10x1x4xf32> -> vector<10x16x4xf32>
    %22 = tpu.concatenate %19, %16, %21 in 2 : vector<10x16x4xf32>, vector<10x16x4xf32>, vector<10x16x4xf32> -> vector<10x16x12xf32>
    %23 = vector.shape_cast %22 : vector<10x16x12xf32> to vector<160x12xf32>
    %c0_11 = arith.constant 0 : index
    %c0_12 = arith.constant 0 : index
    %24 = vector.load %arg5[%c0_11, %c0_12] : memref<36x4xf32, #tpu.memory_space<vmem>>, vector<36x4xf32>
    %c0_13 = arith.constant 0 : index
    %c0_14 = arith.constant 0 : index
    %25 = vector.load %arg6[%c0_13, %c0_14] : memref<1x4xf32, #tpu.memory_space<vmem>>, vector<1x4xf32>
    %26 = vector.extract_strided_slice %23 {offsets = [0, 0], sizes = [128, 12], strides = [1, 1]} : vector<160x12xf32> to vector<128x12xf32>
    %27 = vector.extract_strided_slice %24 {offsets = [0, 0], sizes = [12, 4], strides = [1, 1]} : vector<36x4xf32> to vector<12x4xf32>
    %cst_15 = arith.constant dense<0.000000e+00> : vector<128x4xf32>
    %28 = tpu.matmul %26, %27, %cst_15 {dimension_numbers = #tpu.dot_dimension_numbers<[1], [0], [0], [1], [0, 0, 1, 1], [], []>} : vector<128x12xf32>, vector<12x4xf32>, vector<128x4xf32> -> vector<128x4xf32>
    %29 = vector.broadcast %25 : vector<1x4xf32> to vector<128x4xf32>
    %30 = arith.addf %29, %28 : vector<128x4xf32>
    %31 = vector.extract_strided_slice %23 {offsets = [16, 0], sizes = [128, 12], strides = [1, 1]} : vector<160x12xf32> to vector<128x12xf32>
    %32 = vector.extract_strided_slice %24 {offsets = [12, 0], sizes = [12, 4], strides = [1, 1]} : vector<36x4xf32> to vector<12x4xf32>
    %cst_16 = arith.constant dense<0.000000e+00> : vector<128x4xf32>
    %33 = tpu.matmul %31, %32, %cst_16 {dimension_numbers = #tpu.dot_dimension_numbers<[1], [0], [0], [1], [0, 0, 1, 1], [], []>} : vector<128x12xf32>, vector<12x4xf32>, vector<128x4xf32> -> vector<128x4xf32>
    %34 = arith.addf %30, %33 : vector<128x4xf32>
    %35 = vector.extract_strided_slice %23 {offsets = [32, 0], sizes = [128, 12], strides = [1, 1]} : vector<160x12xf32> to vector<128x12xf32>
    %36 = vector.extract_strided_slice %24 {offsets = [24, 0], sizes = [12, 4], strides = [1, 1]} : vector<36x4xf32> to vector<12x4xf32>
    %cst_17 = arith.constant dense<0.000000e+00> : vector<128x4xf32>
    %37 = tpu.matmul %35, %36, %cst_17 {dimension_numbers = #tpu.dot_dimension_numbers<[1], [0], [0], [1], [0, 0, 1, 1], [], []>} : vector<128x12xf32>, vector<12x4xf32>, vector<128x4xf32> -> vector<128x4xf32>
    %38 = arith.addf %34, %37 : vector<128x4xf32>
    %39 = arith.negf %38 : vector<128x4xf32>
    %40 = math.exp %39 : vector<128x4xf32>
    %cst_18 = arith.constant 1.000000e+00 : f32
    %41 = vector.broadcast %cst_18 : f32 to vector<128x4xf32>
    %42 = arith.addf %41, %40 : vector<128x4xf32>
    %43 = arith.divf %41, %42 : vector<128x4xf32>
    %44 = vector.shape_cast %1 : vector<8x16x4xf32> to vector<128x4xf32>
    %45 = arith.mulf %44, %43 : vector<128x4xf32>
    %46 = vector.shape_cast %45 : vector<128x4xf32> to vector<8x16x4xf32>
    %c0_19 = arith.constant 0 : index
    %c0_20 = arith.constant 0 : index
    %c0_21 = arith.constant 0 : index
    %c0_22 = arith.constant 0 : index
    %47 = vector.load %arg7[%c0_19, %c0_20, %c0_21, %c0_22] : memref<1x8x16x4xf32, #tpu.memory_space<vmem>>, vector<1x8x16x4xf32>
    %48 = vector.shape_cast %47 : vector<1x8x16x4xf32> to vector<8x16x4xf32>
    %49 = vector.shape_cast %46 : vector<8x16x4xf32> to vector<1x8x16x4xf32>
    tpu.vector_store %arg7[%c0_19, %c0_20, %c0_21, %c0_22], %49 {strides = array<i32>} : memref<1x8x16x4xf32, #tpu.memory_space<vmem>>, vector<1x8x16x4xf32>,
    return
  }
  func.func @transform_0(%arg0: i32, %arg1: i32) -> (i32, i32, i32, i32) {
    %c0_i32 = arith.constant 0 : i32
    %c0_i32_0 = arith.constant 0 : i32
    %c0_i32_1 = arith.constant 0 : i32
    return %arg0, %arg1, %c0_i32, %c0_i32_0 : i32, i32, i32, i32
  }
  func.func @transform_1(%arg0: i32, %arg1: i32) -> (i32, i32, i32, i32) {
    %c8_i32 = arith.constant 8 : i32
    %0 = arith.muli %arg1, %c8_i32 : i32
    %c1_i32 = arith.constant 1 : i32
    %1 = arith.subi %0, %c1_i32 : i32
    %c0_i32 = arith.constant 0 : i32
    %2 = arith.maxsi %1, %c0_i32 : i32
    %c0_i32_0 = arith.constant 0 : i32
    %c0_i32_1 = arith.constant 0 : i32
    %c0_i32_2 = arith.constant 0 : i32
    return %arg0, %2, %c0_i32_0, %c0_i32_1 : i32, i32, i32, i32
  }
  func.func @transform_2(%arg0: i32, %arg1: i32) -> (i32, i32, i32, i32) {
    %c1_i32 = arith.constant 1 : i32
    %0 = arith.addi %arg1, %c1_i32 : i32
    %c8_i32 = arith.constant 8 : i32
    %1 = arith.muli %0, %c8_i32 : i32
    %c15_i32 = arith.constant 15 : i32
    %2 = arith.minsi %1, %c15_i32 : i32
    %c0_i32 = arith.constant 0 : i32
    %c0_i32_0 = arith.constant 0 : i32
    %c0_i32_1 = arith.constant 0 : i32
    return %arg0, %2, %c0_i32, %c0_i32_0 : i32, i32, i32, i32
  }
  func.func @transform_3(%arg0: i32, %arg1: i32) -> (i32, i32) {
    %c0_i32 = arith.constant 0 : i32
    %c0_i32_0 = arith.constant 0 : i32
    %c0_i32_1 = arith.constant 0 : i32
    return %c0_i32, %c0_i32_0 : i32, i32
  }
  func.func @transform_4(%arg0: i32, %arg1: i32) -> (i32, i32) {
    %c0_i32 = arith.constant 0 : i32
    %c0_i32_0 = arith.constant 0 : i32
    %c0_i32_1 = arith.constant 0 : i32
    return %c0_i32, %c0_i32_0 : i32, i32
  }
  func.func @transform_5(%arg0: i32, %arg1: i32) -> (i32, i32, i32, i32) {
    %c0_i32 = arith.constant 0 : i32
    %c0_i32_0 = arith.constant 0 : i32
    %c0_i32_1 = arith.constant 0 : i32
    return %arg0, %arg1, %c0_i32, %c0_i32_0 : i32, i32, i32, i32
  }
}

</mosaic_0001>

<llo_original>
// kernel: _ea_nhwc_impl.1
$region0: #{_ea_nhwc_impl.1}
  #allocation0 [shape = 'u32[]', space=smem, size = 0x4, offset = 0x4, fixed_abs, tag = 'smem constant byte address 0x4 - core index']
  #allocation1 [shape = 'u32[144,128]{1,0:T(1,128)}', space=vmem, size = 0x12000, scoped, tag = 'internal scratch']
  %s0 = inlined_call_operand.vmem [shape: f32[2,16,16,4], index: 0, kind: input, shape index: {}, may-alias: {0,1,2}]
  %s1 = inlined_call_operand.vmem [shape: f32[2,16,16,4], index: 1, kind: input, shape index: {}, may-alias: {0,1,2}]
  %s2 = inlined_call_operand.vmem [shape: f32[2,16,16,4], index: 2, kind: input, shape index: {}, may-alias: {0,1,2}]
  %s3 = inlined_call_operand.vmem [shape: f32[36,4], index: 3, kind: input, shape index: {}]
  %s4 = inlined_call_operand.vmem [shape: f32[1,4], index: 4, kind: input, shape index: {}]
  %s5 = inlined_call_operand.vmem [shape: f32[2,16,16,4], index: 5, kind: output, shape index: {}]
  %s6 = sld [smem:[#allocation0]]
  $region53: #{_ea_nhwc_impl.1} parent=0
    _
  %s8 = ssub.s32 1, %s6
  %s9 = scalar_select 0, %s8, %s6
  loop: start=0, step=1, limit=6
  $region2: #{_ea_nhwc_impl.1} parent=0 // loop_pre_header
    _
  $region3: #{_ea_nhwc_impl.1} parent=0 // loop_header
    %s11 = sphi 0, %s15
    %p12 = scmp.ge.s32.totalorder %s11, 6
    %s18 = sphi 0, %s30
    %s19 = sphi 0, %s26
    %s20 = sphi 0, %s18
    %s21 = sphi 0, %s19
    %s22 = sphi 0, %s20
    %s23 = sphi 0, %s21
    %s35 = sphi 0, %s37
    %s38 = sphi 0, %s35
    %s39 = sphi 0, %s38
    %s55 = sphi 0, %s39
    %s71 = sphi 0, %s73
    %s74 = sphi 0, %s71
    %s75 = sphi 0, %s74
    %s91 = sphi 0, %s75
    %s107 = sphi 0, %s109
    %s110 = sphi 0, %s107
    %s111 = sphi 0, %s110
    %s127 = sphi 0, %s111
    %s131 = sphi 0, %s131
    %s133 = sphi 0, %s131
    %s134 = sphi 0, %s133
    %s148 = sphi 0, %s134
    %s152 = sphi 0, %s152
    %s154 = sphi 0, %s152
    %s155 = sphi 0, %s154
    %s169 = sphi 0, %s155
    %s177 = sphi 0, %s179
    %s180 = sphi 0, %s177
    %s181 = sphi 0, %s180
    %s197 = sphi 0, %s181
  $region4: #{_ea_nhwc_impl.1} parent=0 // loop_header_branch
    %14 = sbr.rel (%p12) target = $region8
  $region5: #{_ea_nhwc_impl.1} parent=0 // loop_body
    %s16 = ssub.s32 %s11, 1
    %s17 = ssub.s32 %s11, 2
    %s24 = sadd.s32 1, %s19
    %p25 = scmp.ge.s32.totalorder %s24, 2
    %s26 = scalar_select %p25, 0, %s24
    %s27 = sadd.s32 1, %s18
    %s28 = scalar_select %p25, %s27, %s18
    %p29 = scmp.ge.s32.totalorder %s28, 2
    %s30 = scalar_select %p29, 0, %s28
    %s31 = ssub.s32 %s18, %s30
    %s32 = ssub.s32 %s19, %s26
    %s33 = sor.u32 %s31, %s32
    %p34 = scmp.eq.s32.totalorder %s33, 0
    %s36 = sadd.s32 %s35, 1
    %s37 = scalar_select %p34, %s35, %s36
    %p40 = pneg %p34
    %p41 = scmp.eq.s32.totalorder %s11, 3
    %p42 = por %p40, %p41
    %p43 = scmp.ne.s32.totalorder %s35, %s38
    %p44 = scmp.eq.s32.totalorder %s11, 0
    %p45 = por %p43, %p44
    %p46 = scmp.ne.s32.totalorder %s35, %s38
    %p47 = scmp.eq.s32.totalorder %s16, 3
    %p48 = por %p46, %p47
    %p49 = scmp.ne.s32.totalorder %s38, %s39
    %p50 = scmp.eq.s32.totalorder %s16, 0
    %p51 = por %p49, %p50
    %p52 = scmp.ne.s32.totalorder %s38, %s39
    %p53 = scmp.eq.s32.totalorder %s17, 3
    %p54 = por %p52, %p53
    %p56 = scmp.ne.s32.totalorder %s39, %s55
    %p57 = scmp.eq.s32.totalorder %s17, 0
    %p58 = por %p56, %p57
    %s59 = smul.u32 %s19, 8
    %s60 = ssub.s32 %s59, 1
    %p61 = scmp.gt.s32.totalorder %s60, 0
    %s62 = scalar_select %p61, %s60, 0
    %s63 = smul.u32 %s26, 8
    %s64 = ssub.s32 %s63, 1
    %p65 = scmp.gt.s32.totalorder %s64, 0
    %s66 = scalar_select %p65, %s64, 0
    %s67 = ssub.s32 %s18, %s30
    %s68 = ssub.s32 %s62, %s66
    %s69 = sor.u32 %s67, %s68
    %p70 = scmp.eq.s32.totalorder %s69, 0
    %s72 = sadd.s32 %s71, 1
    %s73 = scalar_select %p70, %s71, %s72
    %p76 = pneg %p70
    %p77 = scmp.eq.s32.totalorder %s11, 3
    %p78 = por %p76, %p77
    %p79 = scmp.ne.s32.totalorder %s71, %s74
    %p80 = scmp.eq.s32.totalorder %s11, 0
    %p81 = por %p79, %p80
    %p82 = scmp.ne.s32.totalorder %s71, %s74
    %p83 = scmp.eq.s32.totalorder %s16, 3
    %p84 = por %p82, %p83
    %p85 = scmp.ne.s32.totalorder %s74, %s75
    %p86 = scmp.eq.s32.totalorder %s16, 0
    %p87 = por %p85, %p86
    %p88 = scmp.ne.s32.totalorder %s74, %s75
    %p89 = scmp.eq.s32.totalorder %s17, 3
    %p90 = por %p88, %p89
    %p92 = scmp.ne.s32.totalorder %s75, %s91
    %p93 = scmp.eq.s32.totalorder %s17, 0
    %p94 = por %p92, %p93
    %s95 = sadd.s32 %s19, 1
    %s96 = smul.u32 %s95, 8
    %p97 = scmp.lt.s32.totalorder %s96, 15
    %s98 = scalar_select %p97, %s96, 15
    %s99 = sadd.s32 %s26, 1
    %s100 = smul.u32 %s99, 8
    %p101 = scmp.lt.s32.totalorder %s100, 15
    %s102 = scalar_select %p101, %s100, 15
    %s103 = ssub.s32 %s18, %s30
    %s104 = ssub.s32 %s98, %s102
    %s105 = sor.u32 %s103, %s104
    %p106 = scmp.eq.s32.totalorder %s105, 0
    %s108 = sadd.s32 %s107, 1
    %s109 = scalar_select %p106, %s107, %s108
    %p112 = pneg %p106
    %p113 = scmp.eq.s32.totalorder %s11, 3
    %p114 = por %p112, %p113
    %p115 = scmp.ne.s32.totalorder %s107, %s110
    %p116 = scmp.eq.s32.totalorder %s11, 0
    %p117 = por %p115, %p116
    %p118 = scmp.ne.s32.totalorder %s107, %s110
    %p119 = scmp.eq.s32.totalorder %s16, 3
    %p120 = por %p118, %p119
    %p121 = scmp.ne.s32.totalorder %s110, %s111
    %p122 = scmp.eq.s32.totalorder %s16, 0
    %p123 = por %p121, %p122
    %p124 = scmp.ne.s32.totalorder %s110, %s111
    %p125 = scmp.eq.s32.totalorder %s17, 3
    %p126 = por %p124, %p125
    %p128 = scmp.ne.s32.totalorder %s111, %s127
    %p129 = scmp.eq.s32.totalorder %s17, 0
    %p130 = por %p128, %p129
    %s132 = sadd.s32 %s131, 1
    %p135 = scmp.eq.s32.totalorder %s11, 3
    %p136 = scmp.ne.s32.totalorder %s131, %s133
    %p137 = scmp.eq.s32.totalorder %s11, 0
    %p138 = por %p136, %p137
    %p139 = scmp.ne.s32.totalorder %s131, %s133
    %p140 = scmp.eq.s32.totalorder %s16, 3
    %p141 = por %p139, %p140
    %p142 = scmp.ne.s32.totalorder %s133, %s134
    %p143 = scmp.eq.s32.totalorder %s16, 0
    %p144 = por %p142, %p143
    %p145 = scmp.ne.s32.totalorder %s133, %s134
    %p146 = scmp.eq.s32.totalorder %s17, 3
    %p147 = por %p145, %p146
    %p149 = scmp.ne.s32.totalorder %s134, %s148
    %p150 = scmp.eq.s32.totalorder %s17, 0
    %p151 = por %p149, %p150
    %s153 = sadd.s32 %s152, 1
    %p156 = scmp.eq.s32.totalorder %s11, 3
    %p157 = scmp.ne.s32.totalorder %s152, %s154
    %p158 = scmp.eq.s32.totalorder %s11, 0
    %p159 = por %p157, %p158
    %p160 = scmp.ne.s32.totalorder %s152, %s154
    %p161 = scmp.eq.s32.totalorder %s16, 3
    %p162 = por %p160, %p161
    %p163 = scmp.ne.s32.totalorder %s154, %s155
    %p164 = scmp.eq.s32.totalorder %s16, 0
    %p165 = por %p163, %p164
    %p166 = scmp.ne.s32.totalorder %s154, %s155
    %p167 = scmp.eq.s32.totalorder %s17, 3
    %p168 = por %p166, %p167
    %p170 = scmp.ne.s32.totalorder %s155, %s169
    %p171 = scmp.eq.s32.totalorder %s17, 0
    %p172 = por %p170, %p171
    %s173 = ssub.s32 %s18, %s30
    %s174 = ssub.s32 %s19, %s26
    %s175 = sor.u32 %s173, %s174
    %p176 = scmp.eq.s32.totalorder %s175, 0
    %s178 = sadd.s32 %s177, 1
    %s179 = scalar_select %p176, %s177, %s178
    %p182 = pneg %p176
    %p183 = scmp.eq.s32.totalorder %s11, 3
    %p184 = por %p182, %p183
    %p185 = scmp.ne.s32.totalorder %s177, %s180
    %p186 = scmp.eq.s32.totalorder %s11, 0
    %p187 = por %p185, %p186
    %p188 = scmp.ne.s32.totalorder %s177, %s180
    %p189 = scmp.eq.s32.totalorder %s16, 3
    %p190 = por %p188, %p189
    %p191 = scmp.ne.s32.totalorder %s180, %s181
    %p192 = scmp.eq.s32.totalorder %s16, 0
    %p193 = por %p191, %p192
    %p194 = scmp.ne.s32.totalorder %s180, %s181
    %p195 = scmp.eq.s32.totalorder %s17, 3
    %p196 = por %p194, %p195
    %p198 = scmp.ne.s32.totalorder %s181, %s197
    %p199 = scmp.eq.s32.totalorder %s17, 0
    %p200 = por %p198, %p199
    %p201 = scmp.le.s32.totalorder 1, %s11
    %p202 = scmp.lt.s32.totalorder %s11, 5
    %p203 = pnand %p201, %p202
    %p204 = pneg %p203
    // Predicated region
    $region9: #{_ea_nhwc_impl.1} parent=5 // pred_check
      _
    $region10: #{_ea_nhwc_impl.1} parent=5 // pred_check_branch
      %206 = sbr.rel (%p203) target = $region12
    $region11: #{_ea_nhwc_impl.1} parent=5 // pred_region
      %s207 = ssub.s32 %s11, 1
      // Predicated region
      $region13: #{_ea_nhwc_impl.1} parent=11 // pred_check
        %p208 = pneg %p144
      $region14: #{_ea_nhwc_impl.1} parent=11 // pred_check_branch
        %210 = sbr.rel (%p208) target = $region16
      $region15: #{_ea_nhwc_impl.1} parent=11 // pred_region
        _
      $region16: #{_ea_nhwc_impl.1} parent=11 // pred_fallthru
        _
      // Predicated region
      $region17: #{_ea_nhwc_impl.1} parent=11 // pred_check
        %p211 = pneg %p165
      $region18: #{_ea_nhwc_impl.1} parent=11 // pred_check_branch
        %213 = sbr.rel (%p211) target = $region20
      $region19: #{_ea_nhwc_impl.1} parent=11 // pred_region
        _
      $region20: #{_ea_nhwc_impl.1} parent=11 // pred_fallthru
        _
    $region12: #{_ea_nhwc_impl.1} parent=5 // pred_fallthru
      _
    %p214 = scmp.lt.s32.totalorder %s11, 4
    // Predicated region
    $region21: #{_ea_nhwc_impl.1} parent=5 // pred_check
      %p215 = pneg %p214
    $region22: #{_ea_nhwc_impl.1} parent=5 // pred_check_branch
      %217 = sbr.rel (%p215) target = $region24
    $region23: #{_ea_nhwc_impl.1} parent=5 // pred_region
      // Predicated region
      $region25: #{_ea_nhwc_impl.1} parent=23 // pred_check
        %p218 = pneg %p45
      $region26: #{_ea_nhwc_impl.1} parent=23 // pred_check_branch
        %220 = sbr.rel (%p218) target = $region28
      $region27: #{_ea_nhwc_impl.1} parent=23 // pred_region
        %s221 = smul.u32 8, %s19
        %p222 = scmp.lt.s32.totalorder %s18, 1
        %s223 = scalar_select %p222, %s18, 1
        %p224 = scmp.lt.s32.totalorder %s221, 15
        %s225 = scalar_select %p224, %s221, 15
        %s226 = smul.addr %s225, 2
        %s227 = smul.addr %s223, 32
        %s228 = sadd.s32 %s226, %s227
        %s229 = smul.addr %s228, 8
        %s230 = scalar_lea.vmem %s0, %s229
        %s231 = smul.u32 8, %s19
      $region28: #{_ea_nhwc_impl.1} parent=23 // pred_fallthru
        _
      // Predicated region
      $region29: #{_ea_nhwc_impl.1} parent=23 // pred_check
        %p232 = pneg %p81
      $region30: #{_ea_nhwc_impl.1} parent=23 // pred_check_branch
        %234 = sbr.rel (%p232) target = $region32
      $region31: #{_ea_nhwc_impl.1} parent=23 // pred_region
        %s235 = smul.u32 %s19, 8
        %s236 = ssub.s32 %s235, 1
        %p237 = scmp.gt.s32.totalorder %s236, 0
        %s238 = scalar_select %p237, %s236, 0
        %p239 = scmp.lt.s32.totalorder %s18, 1
        %s240 = scalar_select %p239, %s18, 1
        %p241 = scmp.lt.s32.totalorder %s238, 15
        %s242 = scalar_select %p241, %s238, 15
        %s243 = smul.addr %s242, 2
        %s244 = smul.addr %s240, 32
        %s245 = sadd.s32 %s243, %s244
        %s246 = smul.addr %s245, 8
        %s247 = scalar_lea.vmem %s1, %s246
        %s248 = smul.u32 %s19, 8
        %s249 = ssub.s32 %s248, 1
        %p250 = scmp.gt.s32.totalorder %s249, 0
        %s251 = scalar_select %p250, %s249, 0
      $region32: #{_ea_nhwc_impl.1} parent=23 // pred_fallthru
        _
      // Predicated region
      $region33: #{_ea_nhwc_impl.1} parent=23 // pred_check
        %p252 = pneg %p117
      $region34: #{_ea_nhwc_impl.1} parent=23 // pred_check_branch
        %254 = sbr.rel (%p252) target = $region36
      $region35: #{_ea_nhwc_impl.1} parent=23 // pred_region
        %s255 = sadd.s32 %s19, 1
        %s256 = smul.u32 %s255, 8
        %p257 = scmp.lt.s32.totalorder %s256, 15
        %s258 = scalar_select %p257, %s256, 15
        %p259 = scmp.lt.s32.totalorder %s18, 1
        %s260 = scalar_select %p259, %s18, 1
        %p261 = scmp.lt.s32.totalorder %s258, 15
        %s262 = scalar_select %p261, %s258, 15
        %s263 = smul.addr %s262, 2
        %s264 = smul.addr %s260, 32
        %s265 = sadd.s32 %s263, %s264
        %s266 = smul.addr %s265, 8
        %s267 = scalar_lea.vmem %s2, %s266
        %s268 = sadd.s32 %s19, 1
        %s269 = smul.u32 %s268, 8
        %p270 = scmp.lt.s32.totalorder %s269, 15
        %s271 = scalar_select %p270, %s269, 15
      $region36: #{_ea_nhwc_impl.1} parent=23 // pred_fallthru
        _
    $region24: #{_ea_nhwc_impl.1} parent=5 // pred_fallthru
      _
    %p272 = scmp.le.s32.totalorder 1, %s11
    %p273 = scmp.lt.s32.totalorder %s11, 5
    %p274 = pnand %p272, %p273
    %p275 = pneg %p274
    // Predicated region
    $region37: #{_ea_nhwc_impl.1} parent=5 // pred_check
      _
    $region38: #{_ea_nhwc_impl.1} parent=5 // pred_check_branch
      %277 = sbr.rel (%p274) target = $region40
    $region39: #{_ea_nhwc_impl.1} parent=5 // pred_region
      %s278 = ssub.s32 %s11, 1
      %s279 = smul.u32 8, %s21
      %p280 = scmp.lt.s32.totalorder %s20, 1
      %s281 = scalar_select %p280, %s20, 1
      %p282 = scmp.lt.s32.totalorder %s279, 15
      %s283 = scalar_select %p282, %s279, 15
      %s284 = smul.addr %s283, 2
      %s285 = smul.addr %s281, 32
      %s286 = sadd.s32 %s284, %s285
      %s287 = smul.addr %s286, 8
      %s288 = scalar_lea.vmem %s0, %s287
      %p289 = pneg %p51
      %p290 = pneg %p48
      %s291 = smul.u32 %s21, 8
      %s292 = ssub.s32 %s291, 1
      %p293 = scmp.gt.s32.totalorder %s292, 0
      %s294 = scalar_select %p293, %s292, 0
      %p295 = scmp.lt.s32.totalorder %s20, 1
      %s296 = scalar_select %p295, %s20, 1
      %p297 = scmp.lt.s32.totalorder %s294, 15
      %s298 = scalar_select %p297, %s294, 15
      %s299 = smul.addr %s298, 2
      %s300 = smul.addr %s296, 32
      %s301 = sadd.s32 %s299, %s300
      %s302 = smul.addr %s301, 8
      %s303 = scalar_lea.vmem %s1, %s302
      %p304 = pneg %p87
      %p305 = pneg %p84
      %s306 = sadd.s32 %s21, 1
      %s307 = smul.u32 %s306, 8
      %p308 = scmp.lt.s32.totalorder %s307, 15
      %s309 = scalar_select %p308, %s307, 15
      %p310 = scmp.lt.s32.totalorder %s20, 1
      %s311 = scalar_select %p310, %s20, 1
      %p312 = scmp.lt.s32.totalorder %s309, 15
      %s313 = scalar_select %p312, %s309, 15
      %s314 = smul.addr %s313, 2
      %s315 = smul.addr %s311, 32
      %s316 = sadd.s32 %s314, %s315
      %s317 = smul.addr %s316, 8
      %s318 = scalar_lea.vmem %s2, %s317
      %p319 = pneg %p123
      %p320 = pneg %p120
      %p321 = pneg %p144
      %p322 = pneg %p141
      %p323 = pneg %p165
      %p324 = pneg %p162
      %p325 = pneg %p193
      %p326 = pneg %p190
      %s327 = smul.u32 8, %s21
      %p328 = scmp.lt.s32.totalorder %s20, 1
      %s329 = scalar_select %p328, %s20, 1
      %p330 = scmp.lt.s32.totalorder %s327, 15
      %s331 = scalar_select %p330, %s327, 15
      %s332 = smul.addr %s331, 2
      %s333 = smul.addr %s329, 32
      %s334 = sadd.s32 %s332, %s333
      %s335 = smul.addr %s334, 8
      %s336 = scalar_lea.vmem %s5, %s335
      %s337 = smul.u32 8, %s21
      %p338 = scmp.lt.s32.totalorder %s20, 1
      %s339 = scalar_select %p338, %s20, 1
      %p340 = scmp.lt.s32.totalorder %s337, 15
      %s341 = scalar_select %p340, %s337, 15
      %s342 = smul.addr %s341, 2
      %s343 = smul.addr %s339, 32
      %s344 = sadd.s32 %s342, %s343
      %s345 = smul.addr %s344, 8
      %s346 = scalar_lea.vmem %s0, %s345
      %s347 = smul.u32 8, %s21
      %s348 = smul.u32 %s21, 8
      %s349 = ssub.s32 %s348, 1
      %p350 = scmp.gt.s32.totalorder %s349, 0
      %s351 = scalar_select %p350, %s349, 0
      %p352 = scmp.lt.s32.totalorder %s20, 1
      %s353 = scalar_select %p352, %s20, 1
      %p354 = scmp.lt.s32.totalorder %s351, 15
      %s355 = scalar_select %p354, %s351, 15
      %s356 = smul.addr %s355, 2
      %s357 = smul.addr %s353, 32
      %s358 = sadd.s32 %s356, %s357
      %s359 = smul.addr %s358, 8
      %s360 = scalar_lea.vmem %s1, %s359
      %s361 = smul.u32 %s21, 8
      %s362 = ssub.s32 %s361, 1
      %p363 = scmp.gt.s32.totalorder %s362, 0
      %s364 = scalar_select %p363, %s362, 0
      %s365 = sadd.s32 %s21, 1
      %s366 = smul.u32 %s365, 8
      %p367 = scmp.lt.s32.totalorder %s366, 15
      %s368 = scalar_select %p367, %s366, 15
      %p369 = scmp.lt.s32.totalorder %s20, 1
      %s370 = scalar_select %p369, %s20, 1
      %p371 = scmp.lt.s32.totalorder %s368, 15
      %s372 = scalar_select %p371, %s368, 15
      %s373 = smul.addr %s372, 2
      %s374 = smul.addr %s370, 32
      %s375 = sadd.s32 %s373, %s374
      %s376 = smul.addr %s375, 8
      %s377 = scalar_lea.vmem %s2, %s376
      %s378 = sadd.s32 %s21, 1
      %s379 = smul.u32 %s378, 8
      %p380 = scmp.lt.s32.totalorder %s379, 15
      %s381 = scalar_select %p380, %s379, 15
      %s382 = smul.u32 8, %s21
      %p383 = scmp.lt.s32.totalorder %s20, 1
      %s384 = scalar_select %p383, %s20, 1
      %p385 = scmp.lt.s32.totalorder %s382, 15
      %s386 = scalar_select %p385, %s382, 15
      %s387 = smul.addr %s386, 2
      %s388 = smul.addr %s384, 32
      %s389 = sadd.s32 %s387, %s388
      %s390 = smul.addr %s389, 8
      %s391 = scalar_lea.vmem %s5, %s390
      %s392 = smul.u32 8, %s21
      %v393 = vld [vmem:[%s346] sm:$0xff]
      %v394 = vld [vmem:[%s346 + $0x8] sm:$0xff]
      %v395 = vld [vmem:[%s346 + $0x10] sm:$0xff]
      %v396 = vld [vmem:[%s346 + $0x18] sm:$0xff]
      %v397 = vld [vmem:[%s346 + $0x20] sm:$0xff]
      %v398 = vld [vmem:[%s346 + $0x28] sm:$0xff]
      %v399 = vld [vmem:[%s346 + $0x30] sm:$0xff]
      %v400 = vld [vmem:[%s346 + $0x38] sm:$0xff]
      %v401 = vld [vmem:[%s346 + $0x40] sm:$0xff]
      %v402 = vld [vmem:[%s346 + $0x48] sm:$0xff]
      %v403 = vld [vmem:[%s346 + $0x50] sm:$0xff]
      %v404 = vld [vmem:[%s346 + $0x58] sm:$0xff]
      %v405 = vld [vmem:[%s346 + $0x60] sm:$0xff]
      %v406 = vld [vmem:[%s346 + $0x68] sm:$0xff]
      %v407 = vld [vmem:[%s346 + $0x70] sm:$0xff]
      %v408 = vld [vmem:[%s346 + $0x78] sm:$0xff]
      %v409 = vld [vmem:[%s360] sm:$0xff]
      %v410 = vld [vmem:[%s360 + $0x8] sm:$0xff]
      %p411 = scmp.gt.s32.totalorder %s21, 0
      %s412 = scalar_select %p411, 1, 0
      %s413 = scvt.s32.f32 %s412
      %v414 = vstv %s413
      %v415 = vmul.f32 %v409, %v414
      %v416 = vmul.f32 %v410, %v414
      %v417 = vld [vmem:[%s377] sm:$0xff]
      %v418 = vld [vmem:[%s377 + $0x8] sm:$0xff]
      %p419 = scmp.lt.s32.totalorder %s21, 1
      %s420 = scalar_select %p419, 1, 0
      %s421 = scvt.s32.f32 %s420
      %v422 = vstv %s421
      %v423 = vmul.f32 %v417, %v422
      %v424 = vmul.f32 %v418, %v422
      %vm445 = vcmask 1040384
      %v446 = vrot.slane %v415, 7
      %v447 = vrot.slane %v416, 7
      %v448 = vsel %vm445, %v446, %v447
      %v449 = vrot.slane %v393, 7
      %v450 = vrot.slane %v394, 7
      %v451 = vsel %vm445, %v449, %v450
      %v452 = vrot.slane %v395, 7
      %v453 = vrot.slane %v396, 7
      %v454 = vsel %vm445, %v452, %v453
      %v455 = vrot.slane %v397, 7
      %v456 = vrot.slane %v398, 7
      %v457 = vsel %vm445, %v455, %v456
      %v458 = vrot.slane %v399, 7
      %v459 = vrot.slane %v400, 7
      %v460 = vsel %vm445, %v458, %v459
      %v461 = vrot.slane %v401, 7
      %v462 = vrot.slane %v402, 7
      %v463 = vsel %vm445, %v461, %v462
      %v464 = vrot.slane %v403, 7
      %v465 = vrot.slane %v404, 7
      %v466 = vsel %vm445, %v464, %v465
      %v467 = vrot.slane %v405, 7
      %v468 = vrot.slane %v406, 7
      %v469 = vsel %vm445, %v467, %v468
      %v470 = vrot.slane %v407, 7
      %v471 = vrot.slane %v408, 7
      %v472 = vsel %vm445, %v470, %v471
      %v473 = vrot.slane %v423, 7
      %v474 = vrot.slane %v424, 7
      %v475 = vsel %vm445, %v473, %v474
      %v496 = vsel %vm445, 0.0, %v446
      %v497 = vsel %vm445, 0.0, %v449
      %v498 = vsel %vm445, 0.0, %v452
      %v499 = vsel %vm445, 0.0, %v455
      %v500 = vsel %vm445, 0.0, %v458
      %v501 = vsel %vm445, 0.0, %v461
      %v502 = vsel %vm445, 0.0, %v464
      %v503 = vsel %vm445, 0.0, %v467
      %v504 = vsel %vm445, 0.0, %v470
      %v505 = vsel %vm445, 0.0, %v473
      %vm506 = vcmask 1046528
      %v507 = vrot.slane %v415, 1
      %v508 = vrot.slane %v416, 1
      %v509 = vsel %vm506, %v507, %v508
      %v510 = vrot.slane %v393, 1
      %v511 = vrot.slane %v394, 1
      %v512 = vsel %vm506, %v510, %v511
      %v513 = vrot.slane %v395, 1
      %v514 = vrot.slane %v396, 1
      %v515 = vsel %vm506, %v513, %v514
      %v516 = vrot.slane %v397, 1
      %v517 = vrot.slane %v398, 1
      %v518 = vsel %vm506, %v516, %v517
      %v519 = vrot.slane %v399, 1
      %v520 = vrot.slane %v400, 1
      %v521 = vsel %vm506, %v519, %v520
      %v522 = vrot.slane %v401, 1
      %v523 = vrot.slane %v402, 1
      %v524 = vsel %vm506, %v522, %v523
      %v525 = vrot.slane %v403, 1
      %v526 = vrot.slane %v404, 1
      %v527 = vsel %vm506, %v525, %v526
      %v528 = vrot.slane %v405, 1
      %v529 = vrot.slane %v406, 1
      %v530 = vsel %vm506, %v528, %v529
      %v531 = vrot.slane %v407, 1
      %v532 = vrot.slane %v408, 1
      %v533 = vsel %vm506, %v531, %v532
      %v534 = vrot.slane %v423, 1
      %v535 = vrot.slane %v424, 1
      %v536 = vsel %vm506, %v534, %v535
      %v547 = vsel %vm506, %v508, 0.0
      %v548 = vsel %vm506, %v511, 0.0
      %v549 = vsel %vm506, %v514, 0.0
      %v550 = vsel %vm506, %v517, 0.0
      %v551 = vsel %vm506, %v520, 0.0
      %v552 = vsel %vm506, %v523, 0.0
      %v553 = vsel %vm506, %v526, 0.0
      %v554 = vsel %vm506, %v529, 0.0
      %v555 = vsel %vm506, %v532, 0.0
      %v556 = vsel %vm506, %v535, 0.0
      %557 = vrot.lane.b32.xlu0 %v415, 4
      %v558 = vpop.permute.xlu0 %557
      %559 = vrot.lane.b32.xlu0 %v416, 4
      %v560 = vpop.permute.xlu0 %559
      %561 = vrot.lane.b32.xlu0 %v393, 4
      %v562 = vpop.permute.xlu0 %561
      %563 = vrot.lane.b32.xlu0 %v394, 4
      %v564 = vpop.permute.xlu0 %563
      %565 = vrot.lane.b32.xlu0 %v395, 4
      %v566 = vpop.permute.xlu0 %565
      %567 = vrot.lane.b32.xlu0 %v396, 4
      %v568 = vpop.permute.xlu0 %567
      %569 = vrot.lane.b32.xlu0 %v397, 4
      %v570 = vpop.permute.xlu0 %569
      %571 = vrot.lane.b32.xlu0 %v398, 4
      %v572 = vpop.permute.xlu0 %571
      %573 = vrot.lane.b32.xlu0 %v399, 4
      %v574 = vpop.permute.xlu0 %573
      %575 = vrot.lane.b32.xlu0 %v400, 4
      %v576 = vpop.permute.xlu0 %575
      %577 = vrot.lane.b32.xlu0 %v401, 4
      %v578 = vpop.permute.xlu0 %577
      %579 = vrot.lane.b32.xlu0 %v402, 4
      %v580 = vpop.permute.xlu0 %579
      %581 = vrot.lane.b32.xlu0 %v403, 4
      %v582 = vpop.permute.xlu0 %581
      %583 = vrot.lane.b32.xlu0 %v404, 4
      %v584 = vpop.permute.xlu0 %583
      %585 = vrot.lane.b32.xlu0 %v405, 4
      %v586 = vpop.permute.xlu0 %585
      %587 = vrot.lane.b32.xlu0 %v406, 4
      %v588 = vpop.permute.xlu0 %587
      %589 = vrot.lane.b32.xlu0 %v407, 4
      %v590 = vpop.permute.xlu0 %589
      %591 = vrot.lane.b32.xlu0 %v408, 4
      %v592 = vpop.permute.xlu0 %591
      %593 = vrot.lane.b32.xlu0 %v423, 4
      %v594 = vpop.permute.xlu0 %593
      %595 = vrot.lane.b32.xlu0 %v424, 4
      %v596 = vpop.permute.xlu0 %595
      %627 = vrot.lane.b32.xlu0 %v509, 8
      %v628 = vpop.permute.xlu0 %627
      %629 = vrot.lane.b32.xlu0 %v547, 8
      %v630 = vpop.permute.xlu0 %629
      %631 = vrot.lane.b32.xlu0 %v512, 8
      %v632 = vpop.permute.xlu0 %631
      %633 = vrot.lane.b32.xlu0 %v548, 8
      %v634 = vpop.permute.xlu0 %633
      %635 = vrot.lane.b32.xlu0 %v515, 8
      %v636 = vpop.permute.xlu0 %635
      %637 = vrot.lane.b32.xlu0 %v549, 8
      %v638 = vpop.permute.xlu0 %637
      %639 = vrot.lane.b32.xlu0 %v518, 8
      %v640 = vpop.permute.xlu0 %639
      %641 = vrot.lane.b32.xlu0 %v550, 8
      %v642 = vpop.permute.xlu0 %641
      %643 = vrot.lane.b32.xlu0 %v521, 8
      %v644 = vpop.permute.xlu0 %643
      %645 = vrot.lane.b32.xlu0 %v551, 8
      %v646 = vpop.permute.xlu0 %645
      %647 = vrot.lane.b32.xlu0 %v524, 8
      %v648 = vpop.permute.xlu0 %647
      %649 = vrot.lane.b32.xlu0 %v552, 8
      %v650 = vpop.permute.xlu0 %649
      %651 = vrot.lane.b32.xlu0 %v527, 8
      %v652 = vpop.permute.xlu0 %651
      %653 = vrot.lane.b32.xlu0 %v553, 8
      %v654 = vpop.permute.xlu0 %653
      %655 = vrot.lane.b32.xlu0 %v530, 8
      %v656 = vpop.permute.xlu0 %655
      %657 = vrot.lane.b32.xlu0 %v554, 8
      %v658 = vpop.permute.xlu0 %657
      %659 = vrot.lane.b32.xlu0 %v533, 8
      %v660 = vpop.permute.xlu0 %659
      %661 = vrot.lane.b32.xlu0 %v555, 8
      %v662 = vpop.permute.xlu0 %661
      %663 = vrot.lane.b32.xlu0 %v536, 8
      %v664 = vpop.permute.xlu0 %663
      %665 = vrot.lane.b32.xlu0 %v556, 8
      %v666 = vpop.permute.xlu0 %665
      %vm687 = vcmask 31744
      %v688 = vsel %vm687, %v496, %v558
      %v689 = vsel %vm687, %v448, %v560
      %v690 = vsel %vm687, %v497, %v562
      %v691 = vsel %vm687, %v451, %v564
      %v692 = vsel %vm687, %v498, %v566
      %v693 = vsel %vm687, %v454, %v568
      %v694 = vsel %vm687, %v499, %v570
      %v695 = vsel %vm687, %v457, %v572
      %v696 = vsel %vm687, %v500, %v574
      %v697 = vsel %vm687, %v460, %v576
      %v698 = vsel %vm687, %v501, %v578
      %v699 = vsel %vm687, %v463, %v580
      %v700 = vsel %vm687, %v502, %v582
      %v701 = vsel %vm687, %v466, %v584
      %v702 = vsel %vm687, %v503, %v586
      %v703 = vsel %vm687, %v469, %v588
      %v704 = vsel %vm687, %v504, %v590
      %v705 = vsel %vm687, %v472, %v592
      %v706 = vsel %vm687, %v505, %v594
      %v707 = vsel %vm687, %v475, %v596
      %vm708 = vcmask 64512
      %v709 = vsel %vm708, %v688, %v628
      %v710 = vsel %vm708, %v689, %v630
      %v711 = vsel %vm708, %v690, %v632
      %v712 = vsel %vm708, %v691, %v634
      %v713 = vsel %vm708, %v692, %v636
      %v714 = vsel %vm708, %v693, %v638
      %v715 = vsel %vm708, %v694, %v640
      %v716 = vsel %vm708, %v695, %v642
      %v717 = vsel %vm708, %v696, %v644
      %v718 = vsel %vm708, %v697, %v646
      %v719 = vsel %vm708, %v698, %v648
      %v720 = vsel %vm708, %v699, %v650
      %v721 = vsel %vm708, %v700, %v652
      %v722 = vsel %vm708, %v701, %v654
      %v723 = vsel %vm708, %v702, %v656
      %v724 = vsel %vm708, %v703, %v658
      %v725 = vsel %vm708, %v704, %v660
      %v726 = vsel %vm708, %v705, %v662
      %v727 = vsel %vm708, %v706, %v664
      %v728 = vsel %vm708, %v707, %v666
      %v729 = vld [vmem:[%s3] sm:$0xff]
      %v730 = vld [vmem:[%s3 + $0x8] sm:$0xff]
      %v731 = vld [vmem:[%s3 + $0x10] sm:$0xff]
      %v732 = vld [vmem:[%s3 + $0x18] sm:$0xff]
      %v733 = vld [vmem:[%s3 + $0x20] sm:$0xf]
      %v734 = vld [vmem:[%s4] sm:$0x1]
      %vm735 = vcmask 97280
      %v737 = vsel %vm735, %v709, 0
      %v740 = vsel %vm735, %v710, 0
      %v743 = vsel %vm735, %v711, 0
      %v746 = vsel %vm735, %v712, 0
      %v749 = vsel %vm735, %v713, 0
      %v752 = vsel %vm735, %v714, 0
      %v755 = vsel %vm735, %v715, 0
      %v758 = vsel %vm735, %v716, 0
      %v761 = vsel %vm735, %v717, 0
      %v764 = vsel %vm735, %v718, 0
      %v767 = vsel %vm735, %v719, 0
      %v770 = vsel %vm735, %v720, 0
      %v773 = vsel %vm735, %v721, 0
      %v776 = vsel %vm735, %v722, 0
      %v779 = vsel %vm735, %v723, 0
      %v782 = vsel %vm735, %v724, 0
      %vm784 = vcmask 1043456
      %v786 = vsel %vm784, %v730, 0
      %788 = vmatprep.subr.mxu0 0.0
      %789 = vmatpush1.msra.mxu0 0.0
      %790 = vmatprep.subr.mxu0 0.0
      %791 = vmatpush1.msra.mxu0 0.0
      %792 = vmatprep.subr.mxu0 0.0
      %793 = vmatpush1.msra.mxu0 0.0
      %794 = vmatprep.subr.mxu0 0.0
      %795 = vmatpush1.msra.mxu0 0.0
      %796 = vmatprep.subr.mxu0 0.0
      %797 = vmatpush1.msra.mxu0 0.0
      %798 = vmatprep.subr.mxu0 0.0
      %799 = vmatpush1.msra.mxu0 0.0
      %800 = vmatprep.subr.mxu0 0.0
      %801 = vmatpush1.msra.mxu0 0.0
      %802 = vmatprep.subr.mxu0 0.0
      %803 = vmatpush1.msra.mxu0 0.0
      %804 = vmatprep.subr.mxu0 0.0
      %805 = vmatpush1.msra.mxu0 0.0
      %806 = vmatprep.subr.mxu0 0.0
      %807 = vmatpush1.msra.mxu0 0.0
      %808 = vmatprep.subr.mxu0 0.0
      %809 = vmatpush1.msra.mxu0 0.0
      %810 = vmatprep.subr.mxu0 0.0
      %811 = vmatpush1.msra.mxu0 0.0
      %812 = vmatprep.subr.mxu0 0.0
      %813 = vmatpush1.msra.mxu0 0.0
      %814 = vmatprep.subr.mxu0 0.0
      %815 = vmatpush1.msra.mxu0 0.0
      %816 = vmatprep.subr.mxu0 0.0
      %817 = vmatpush1.msra.mxu0 %v786
      %818 = vmatprep.subr.mxu0 0.0
      %819 = vmatpush1.msra.mxu0 %v729
      %820 = vmatprep.subr.mxu0 0.0
      %821 = vmatpush2.msra.mxu0 0.0
      %822 = vmatprep.subr.mxu0 0.0
      %823 = vmatpush2.msra.mxu0 0.0
      %824 = vmatprep.subr.mxu0 0.0
      %825 = vmatpush2.msra.mxu0 0.0
      %826 = vmatprep.subr.mxu0 0.0
      %827 = vmatpush2.msra.mxu0 0.0
      %828 = vmatprep.subr.mxu0 0.0
      %829 = vmatpush2.msra.mxu0 0.0
      %830 = vmatprep.subr.mxu0 0.0
      %831 = vmatpush2.msra.mxu0 0.0
      %832 = vmatprep.subr.mxu0 0.0
      %833 = vmatpush2.msra.mxu0 0.0
      %834 = vmatprep.subr.mxu0 0.0
      %835 = vmatpush2.msra.mxu0 0.0
      %836 = vmatprep.subr.mxu0 0.0
      %837 = vmatpush2.msra.mxu0 0.0
      %838 = vmatprep.subr.mxu0 0.0
      %839 = vmatpush2.msra.mxu0 0.0
      %840 = vmatprep.subr.mxu0 0.0
      %841 = vmatpush2.msra.mxu0 0.0
      %842 = vmatprep.subr.mxu0 0.0
      %843 = vmatpush2.msra.mxu0 0.0
      %844 = vmatprep.subr.mxu0 0.0
      %845 = vmatpush2.msra.mxu0 0.0
      %846 = vmatprep.subr.mxu0 0.0
      %847 = vmatpush2.msra.mxu0 0.0
      %848 = vmatprep.subr.mxu0 0.0
      %849 = vmatpush2.msra.mxu0 0.0
      %850 = vmatprep.subr.mxu0 0.0
      %851 = vmatpush2.msra.mxu0 0.0
      %852 = vmatprep.mubr.f32.mxu0 0.0
      %853 = vmatmul.mubr.f32.gmra.mxu0 %v737
      %v854 = vpop.f32.mrf.mxu0
      %v855 = vadd.f32 0.0, %v854
      %v856 = vpop.f32.mrf.mxu0
      %857 = vmatprep.mubr.f32.mxu0 0.0
      %858 = vmatmul.mubr.f32.gmra.mxu0 %v740
      %v859 = vpop.f32.mrf.mxu0
      %v860 = vadd.f32 0.0, %v859
      %v861 = vpop.f32.mrf.mxu0
      %862 = vmatprep.mubr.f32.mxu0 0.0
      %863 = vmatmul.mubr.f32.gmra.mxu0 %v743
      %v864 = vpop.f32.mrf.mxu0
      %v865 = vadd.f32 0.0, %v864
      %v866 = vpop.f32.mrf.mxu0
      %867 = vmatprep.mubr.f32.mxu0 0.0
      %868 = vmatmul.mubr.f32.gmra.mxu0 %v746
      %v869 = vpop.f32.mrf.mxu0
      %v870 = vadd.f32 0.0, %v869
      %v871 = vpop.f32.mrf.mxu0
      %872 = vmatprep.mubr.f32.mxu0 0.0
      %873 = vmatmul.mubr.f32.gmra.mxu0 %v749
      %v874 = vpop.f32.mrf.mxu0
      %v875 = vadd.f32 0.0, %v874
      %v876 = vpop.f32.mrf.mxu0
      %877 = vmatprep.mubr.f32.mxu0 0.0
      %878 = vmatmul.mubr.f32.gmra.mxu0 %v752
      %v879 = vpop.f32.mrf.mxu0
      %v880 = vadd.f32 0.0, %v879
      %v881 = vpop.f32.mrf.mxu0
      %882 = vmatprep.mubr.f32.mxu0 0.0
      %883 = vmatmul.mubr.f32.gmra.mxu0 %v755
      %v884 = vpop.f32.mrf.mxu0
      %v885 = vadd.f32 0.0, %v884
      %v886 = vpop.f32.mrf.mxu0
      %887 = vmatprep.mubr.f32.mxu0 0.0
      %888 = vmatmul.mubr.f32.gmra.mxu0 %v758
      %v889 = vpop.f32.mrf.mxu0
      %v890 = vadd.f32 0.0, %v889
      %v891 = vpop.f32.mrf.mxu0
      %892 = vmatprep.mubr.f32.mxu0 0.0
      %893 = vmatmul.mubr.f32.gmra.mxu0 %v761
      %v894 = vpop.f32.mrf.mxu0
      %v895 = vadd.f32 0.0, %v894
      %v896 = vpop.f32.mrf.mxu0
      %897 = vmatprep.mubr.f32.mxu0 0.0
      %898 = vmatmul.mubr.f32.gmra.mxu0 %v764
      %v899 = vpop.f32.mrf.mxu0
      %v900 = vadd.f32 0.0, %v899
      %v901 = vpop.f32.mrf.mxu0
      %902 = vmatprep.mubr.f32.mxu0 0.0
      %903 = vmatmul.mubr.f32.gmra.mxu0 %v767
      %v904 = vpop.f32.mrf.mxu0
      %v905 = vadd.f32 0.0, %v904
      %v906 = vpop.f32.mrf.mxu0
      %907 = vmatprep.mubr.f32.mxu0 0.0
      %908 = vmatmul.mubr.f32.gmra.mxu0 %v770
      %v909 = vpop.f32.mrf.mxu0
      %v910 = vadd.f32 0.0, %v909
      %v911 = vpop.f32.mrf.mxu0
      %912 = vmatprep.mubr.f32.mxu0 0.0
      %913 = vmatmul.mubr.f32.gmra.mxu0 %v773
      %v914 = vpop.f32.mrf.mxu0
      %v915 = vadd.f32 0.0, %v914
      %v916 = vpop.f32.mrf.mxu0
      %917 = vmatprep.mubr.f32.mxu0 0.0
      %918 = vmatmul.mubr.f32.gmra.mxu0 %v776
      %v919 = vpop.f32.mrf.mxu0
      %v920 = vadd.f32 0.0, %v919
      %v921 = vpop.f32.mrf.mxu0
      %922 = vmatprep.mubr.f32.mxu0 0.0
      %923 = vmatmul.mubr.f32.gmra.mxu0 %v779
      %v924 = vpop.f32.mrf.mxu0
      %v925 = vadd.f32 0.0, %v924
      %v926 = vpop.f32.mrf.mxu0
      %927 = vmatprep.mubr.f32.mxu0 0.0
      %928 = vmatmul.mubr.f32.gmra.mxu0 %v782
      %v929 = vpop.f32.mrf.mxu0
      %v930 = vadd.f32 0.0, %v929
      %v931 = vpop.f32.mrf.mxu0
      %932 = vdwg.mxu0
      %v934 = vlaneseq
      %v935 = vshrl.u32 %v934, 7
      %v936 = vsub.s32 0, %v935
      %v937 = vrot.slane %v734, %v936
      %v939 = vadd.f32 %v937, %v855
      %v940 = vadd.f32 %v937, %v860
      %v941 = vadd.f32 %v937, %v865
      %v942 = vadd.f32 %v937, %v870
      %v943 = vadd.f32 %v937, %v875
      %v944 = vadd.f32 %v937, %v880
      %v945 = vadd.f32 %v937, %v885
      %v946 = vadd.f32 %v937, %v890
      %v947 = vadd.f32 %v937, %v895
      %v948 = vadd.f32 %v937, %v900
      %v949 = vadd.f32 %v937, %v905
      %v950 = vadd.f32 %v937, %v910
      %v951 = vadd.f32 %v937, %v915
      %v952 = vadd.f32 %v937, %v920
      %v953 = vadd.f32 %v937, %v925
      %v954 = vadd.f32 %v937, %v930
      %v956 = vrot.slane %v730, 4
      %v957 = vrot.slane %v731, 4
      %v958 = vsel %vm784, %v956, %v957
      %v961 = vsel %vm735, %v725, 0
      %v964 = vsel %vm735, %v726, 0
      %v966 = vsel %vm784, %v957, 0
      %968 = vmatprep.subr.mxu0 0.0
      %969 = vmatpush1.msra.mxu0 0.0
      %970 = vmatprep.subr.mxu0 0.0
      %971 = vmatpush1.msra.mxu0 0.0
      %972 = vmatprep.subr.mxu0 0.0
      %973 = vmatpush1.msra.mxu0 0.0
      %974 = vmatprep.subr.mxu0 0.0
      %975 = vmatpush1.msra.mxu0 0.0
      %976 = vmatprep.subr.mxu0 0.0
      %977 = vmatpush1.msra.mxu0 0.0
      %978 = vmatprep.subr.mxu0 0.0
      %979 = vmatpush1.msra.mxu0 0.0
      %980 = vmatprep.subr.mxu0 0.0
      %981 = vmatpush1.msra.mxu0 0.0
      %982 = vmatprep.subr.mxu0 0.0
      %983 = vmatpush1.msra.mxu0 0.0
      %984 = vmatprep.subr.mxu0 0.0
      %985 = vmatpush1.msra.mxu0 0.0
      %986 = vmatprep.subr.mxu0 0.0
      %987 = vmatpush1.msra.mxu0 0.0
      %988 = vmatprep.subr.mxu0 0.0
      %989 = vmatpush1.msra.mxu0 0.0
      %990 = vmatprep.subr.mxu0 0.0
      %991 = vmatpush1.msra.mxu0 0.0
      %992 = vmatprep.subr.mxu0 0.0
      %993 = vmatpush1.msra.mxu0 0.0
      %994 = vmatprep.subr.mxu0 0.0
      %995 = vmatpush1.msra.mxu0 0.0
      %996 = vmatprep.subr.mxu0 0.0
      %997 = vmatpush1.msra.mxu0 %v966
      %998 = vmatprep.subr.mxu0 0.0
      %999 = vmatpush1.msra.mxu0 %v958
      %1000 = vmatprep.subr.mxu0 0.0
      %1001 = vmatpush2.msra.mxu0 0.0
      %1002 = vmatprep.subr.mxu0 0.0
      %1003 = vmatpush2.msra.mxu0 0.0
      %1004 = vmatprep.subr.mxu0 0.0
      %1005 = vmatpush2.msra.mxu0 0.0
      %1006 = vmatprep.subr.mxu0 0.0
      %1007 = vmatpush2.msra.mxu0 0.0
      %1008 = vmatprep.subr.mxu0 0.0
      %1009 = vmatpush2.msra.mxu0 0.0
      %1010 = vmatprep.subr.mxu0 0.0
      %1011 = vmatpush2.msra.mxu0 0.0
      %1012 = vmatprep.subr.mxu0 0.0
      %1013 = vmatpush2.msra.mxu0 0.0
      %1014 = vmatprep.subr.mxu0 0.0
      %1015 = vmatpush2.msra.mxu0 0.0
      %1016 = vmatprep.subr.mxu0 0.0
      %1017 = vmatpush2.msra.mxu0 0.0
      %1018 = vmatprep.subr.mxu0 0.0
      %1019 = vmatpush2.msra.mxu0 0.0
      %1020 = vmatprep.subr.mxu0 0.0
      %1021 = vmatpush2.msra.mxu0 0.0
      %1022 = vmatprep.subr.mxu0 0.0
      %1023 = vmatpush2.msra.mxu0 0.0
      %1024 = vmatprep.subr.mxu0 0.0
      %1025 = vmatpush2.msra.mxu0 0.0
      %1026 = vmatprep.subr.mxu0 0.0
      %1027 = vmatpush2.msra.mxu0 0.0
      %1028 = vmatprep.subr.mxu0 0.0
      %1029 = vmatpush2.msra.mxu0 0.0
      %1030 = vmatprep.subr.mxu0 0.0
      %1031 = vmatpush2.msra.mxu0 0.0
      %1032 = vmatprep.mubr.f32.mxu0 0.0
      %1033 = vmatmul.mubr.f32.gmra.mxu0 %v743
      %v1034 = vpop.f32.mrf.mxu0
      %v1035 = vadd.f32 0.0, %v1034
      %v1036 = vpop.f32.mrf.mxu0
      %1037 = vmatprep.mubr.f32.mxu0 0.0
      %1038 = vmatmul.mubr.f32.gmra.mxu0 %v746
      %v1039 = vpop.f32.mrf.mxu0
      %v1040 = vadd.f32 0.0, %v1039
      %v1041 = vpop.f32.mrf.mxu0
      %1042 = vmatprep.mubr.f32.mxu0 0.0
      %1043 = vmatmul.mubr.f32.gmra.mxu0 %v749
      %v1044 = vpop.f32.mrf.mxu0
      %v1045 = vadd.f32 0.0, %v1044
      %v1046 = vpop.f32.mrf.mxu0
      %1047 = vmatprep.mubr.f32.mxu0 0.0
      %1048 = vmatmul.mubr.f32.gmra.mxu0 %v752
      %v1049 = vpop.f32.mrf.mxu0
      %v1050 = vadd.f32 0.0, %v1049
      %v1051 = vpop.f32.mrf.mxu0
      %1052 = vmatprep.mubr.f32.mxu0 0.0
      %1053 = vmatmul.mubr.f32.gmra.mxu0 %v755
      %v1054 = vpop.f32.mrf.mxu0
      %v1055 = vadd.f32 0.0, %v1054
      %v1056 = vpop.f32.mrf.mxu0
      %1057 = vmatprep.mubr.f32.mxu0 0.0
      %1058 = vmatmul.mubr.f32.gmra.mxu0 %v758
      %v1059 = vpop.f32.mrf.mxu0
      %v1060 = vadd.f32 0.0, %v1059
      %v1061 = vpop.f32.mrf.mxu0
      %1062 = vmatprep.mubr.f32.mxu0 0.0
      %1063 = vmatmul.mubr.f32.gmra.mxu0 %v761
      %v1064 = vpop.f32.mrf.mxu0
      %v1065 = vadd.f32 0.0, %v1064
      %v1066 = vpop.f32.mrf.mxu0
      %1067 = vmatprep.mubr.f32.mxu0 0.0
      %1068 = vmatmul.mubr.f32.gmra.mxu0 %v764
      %v1069 = vpop.f32.mrf.mxu0
      %v1070 = vadd.f32 0.0, %v1069
      %v1071 = vpop.f32.mrf.mxu0
      %1072 = vmatprep.mubr.f32.mxu0 0.0
      %1073 = vmatmul.mubr.f32.gmra.mxu0 %v767
      %v1074 = vpop.f32.mrf.mxu0
      %v1075 = vadd.f32 0.0, %v1074
      %v1076 = vpop.f32.mrf.mxu0
      %1077 = vmatprep.mubr.f32.mxu0 0.0
      %1078 = vmatmul.mubr.f32.gmra.mxu0 %v770
      %v1079 = vpop.f32.mrf.mxu0
      %v1080 = vadd.f32 0.0, %v1079
      %v1081 = vpop.f32.mrf.mxu0
      %1082 = vmatprep.mubr.f32.mxu0 0.0
      %1083 = vmatmul.mubr.f32.gmra.mxu0 %v773
      %v1084 = vpop.f32.mrf.mxu0
      %v1085 = vadd.f32 0.0, %v1084
      %v1086 = vpop.f32.mrf.mxu0
      %1087 = vmatprep.mubr.f32.mxu0 0.0
      %1088 = vmatmul.mubr.f32.gmra.mxu0 %v776
      %v1089 = vpop.f32.mrf.mxu0
      %v1090 = vadd.f32 0.0, %v1089
      %v1091 = vpop.f32.mrf.mxu0
      %1092 = vmatprep.mubr.f32.mxu0 0.0
      %1093 = vmatmul.mubr.f32.gmra.mxu0 %v779
      %v1094 = vpop.f32.mrf.mxu0
      %v1095 = vadd.f32 0.0, %v1094
      %v1096 = vpop.f32.mrf.mxu0
      %1097 = vmatprep.mubr.f32.mxu0 0.0
      %1098 = vmatmul.mubr.f32.gmra.mxu0 %v782
      %v1099 = vpop.f32.mrf.mxu0
      %v1100 = vadd.f32 0.0, %v1099
      %v1101 = vpop.f32.mrf.mxu0
      %1102 = vmatprep.mubr.f32.mxu0 0.0
      %1103 = vmatmul.mubr.f32.gmra.mxu0 %v961
      %v1104 = vpop.f32.mrf.mxu0
      %v1105 = vadd.f32 0.0, %v1104
      %v1106 = vpop.f32.mrf.mxu0
      %1107 = vmatprep.mubr.f32.mxu0 0.0
      %1108 = vmatmul.mubr.f32.gmra.mxu0 %v964
      %v1109 = vpop.f32.mrf.mxu0
      %v1110 = vadd.f32 0.0, %v1109
      %v1111 = vpop.f32.mrf.mxu0
      %1112 = vdwg.mxu0
      %v1113 = vadd.f32 %v939, %v1035
      %v1114 = vadd.f32 %v940, %v1040
      %v1115 = vadd.f32 %v941, %v1045
      %v1116 = vadd.f32 %v942, %v1050
      %v1117 = vadd.f32 %v943, %v1055
      %v1118 = vadd.f32 %v944, %v1060
      %v1119 = vadd.f32 %v945, %v1065
      %v1120 = vadd.f32 %v946, %v1070
      %v1121 = vadd.f32 %v947, %v1075
      %v1122 = vadd.f32 %v948, %v1080
      %v1123 = vadd.f32 %v949, %v1085
      %v1124 = vadd.f32 %v950, %v1090
      %v1125 = vadd.f32 %v951, %v1095
      %v1126 = vadd.f32 %v952, %v1100
      %v1127 = vadd.f32 %v953, %v1105
      %v1128 = vadd.f32 %v954, %v1110
      %v1130 = vsel %vm735, %v727, 0
      %v1133 = vsel %vm735, %v728, 0
      %v1136 = vsel %vm784, %v733, 0
      %1138 = vmatprep.subr.mxu0 0.0
      %1139 = vmatpush1.msra.mxu0 0.0
      %1140 = vmatprep.subr.mxu0 0.0
      %1141 = vmatpush1.msra.mxu0 0.0
      %1142 = vmatprep.subr.mxu0 0.0
      %1143 = vmatpush1.msra.mxu0 0.0
      %1144 = vmatprep.subr.mxu0 0.0
      %1145 = vmatpush1.msra.mxu0 0.0
      %1146 = vmatprep.subr.mxu0 0.0
      %1147 = vmatpush1.msra.mxu0 0.0
      %1148 = vmatprep.subr.mxu0 0.0
      %1149 = vmatpush1.msra.mxu0 0.0
      %1150 = vmatprep.subr.mxu0 0.0
      %1151 = vmatpush1.msra.mxu0 0.0
      %1152 = vmatprep.subr.mxu0 0.0
      %1153 = vmatpush1.msra.mxu0 0.0
      %1154 = vmatprep.subr.mxu0 0.0
      %1155 = vmatpush1.msra.mxu0 0.0
      %1156 = vmatprep.subr.mxu0 0.0
      %1157 = vmatpush1.msra.mxu0 0.0
      %1158 = vmatprep.subr.mxu0 0.0
      %1159 = vmatpush1.msra.mxu0 0.0
      %1160 = vmatprep.subr.mxu0 0.0
      %1161 = vmatpush1.msra.mxu0 0.0
      %1162 = vmatprep.subr.mxu0 0.0
      %1163 = vmatpush1.msra.mxu0 0.0
      %1164 = vmatprep.subr.mxu0 0.0
      %1165 = vmatpush1.msra.mxu0 0.0
      %1166 = vmatprep.subr.mxu0 0.0
      %1167 = vmatpush1.msra.mxu0 %v1136
      %1168 = vmatprep.subr.mxu0 0.0
      %1169 = vmatpush1.msra.mxu0 %v732
      %1170 = vmatprep.subr.mxu0 0.0
      %1171 = vmatpush2.msra.mxu0 0.0
      %1172 = vmatprep.subr.mxu0 0.0
      %1173 = vmatpush2.msra.mxu0 0.0
      %1174 = vmatprep.subr.mxu0 0.0
      %1175 = vmatpush2.msra.mxu0 0.0
      %1176 = vmatprep.subr.mxu0 0.0
      %1177 = vmatpush2.msra.mxu0 0.0
      %1178 = vmatprep.subr.mxu0 0.0
      %1179 = vmatpush2.msra.mxu0 0.0
      %1180 = vmatprep.subr.mxu0 0.0
      %1181 = vmatpush2.msra.mxu0 0.0
      %1182 = vmatprep.subr.mxu0 0.0
      %1183 = vmatpush2.msra.mxu0 0.0
      %1184 = vmatprep.subr.mxu0 0.0
      %1185 = vmatpush2.msra.mxu0 0.0
      %1186 = vmatprep.subr.mxu0 0.0
      %1187 = vmatpush2.msra.mxu0 0.0
      %1188 = vmatprep.subr.mxu0 0.0
      %1189 = vmatpush2.msra.mxu0 0.0
      %1190 = vmatprep.subr.mxu0 0.0
      %1191 = vmatpush2.msra.mxu0 0.0
      %1192 = vmatprep.subr.mxu0 0.0
      %1193 = vmatpush2.msra.mxu0 0.0
      %1194 = vmatprep.subr.mxu0 0.0
      %1195 = vmatpush2.msra.mxu0 0.0
      %1196 = vmatprep.subr.mxu0 0.0
      %1197 = vmatpush2.msra.mxu0 0.0
      %1198 = vmatprep.subr.mxu0 0.0
      %1199 = vmatpush2.msra.mxu0 0.0
      %1200 = vmatprep.subr.mxu0 0.0
      %1201 = vmatpush2.msra.mxu0 0.0
      %1202 = vmatprep.mubr.f32.mxu0 0.0
      %1203 = vmatmul.mubr.f32.gmra.mxu0 %v749
      %v1204 = vpop.f32.mrf.mxu0
      %v1205 = vadd.f32 0.0, %v1204
      %v1206 = vpop.f32.mrf.mxu0
      %1207 = vmatprep.mubr.f32.mxu0 0.0
      %1208 = vmatmul.mubr.f32.gmra.mxu0 %v752
      %v1209 = vpop.f32.mrf.mxu0
      %v1210 = vadd.f32 0.0, %v1209
      %v1211 = vpop.f32.mrf.mxu0
      %1212 = vmatprep.mubr.f32.mxu0 0.0
      %1213 = vmatmul.mubr.f32.gmra.mxu0 %v755
      %v1214 = vpop.f32.mrf.mxu0
      %v1215 = vadd.f32 0.0, %v1214
      %v1216 = vpop.f32.mrf.mxu0
      %1217 = vmatprep.mubr.f32.mxu0 0.0
      %1218 = vmatmul.mubr.f32.gmra.mxu0 %v758
      %v1219 = vpop.f32.mrf.mxu0
      %v1220 = vadd.f32 0.0, %v1219
      %v1221 = vpop.f32.mrf.mxu0
      %1222 = vmatprep.mubr.f32.mxu0 0.0
      %1223 = vmatmul.mubr.f32.gmra.mxu0 %v761
      %v1224 = vpop.f32.mrf.mxu0
      %v1225 = vadd.f32 0.0, %v1224
      %v1226 = vpop.f32.mrf.mxu0
      %1227 = vmatprep.mubr.f32.mxu0 0.0
      %1228 = vmatmul.mubr.f32.gmra.mxu0 %v764
      %v1229 = vpop.f32.mrf.mxu0
      %v1230 = vadd.f32 0.0, %v1229
      %v1231 = vpop.f32.mrf.mxu0
      %1232 = vmatprep.mubr.f32.mxu0 0.0
      %1233 = vmatmul.mubr.f32.gmra.mxu0 %v767
      %v1234 = vpop.f32.mrf.mxu0
      %v1235 = vadd.f32 0.0, %v1234
      %v1236 = vpop.f32.mrf.mxu0
      %1237 = vmatprep.mubr.f32.mxu0 0.0
      %1238 = vmatmul.mubr.f32.gmra.mxu0 %v770
      %v1239 = vpop.f32.mrf.mxu0
      %v1240 = vadd.f32 0.0, %v1239
      %v1241 = vpop.f32.mrf.mxu0
      %1242 = vmatprep.mubr.f32.mxu0 0.0
      %1243 = vmatmul.mubr.f32.gmra.mxu0 %v773
      %v1244 = vpop.f32.mrf.mxu0
      %v1245 = vadd.f32 0.0, %v1244
      %v1246 = vpop.f32.mrf.mxu0
      %1247 = vmatprep.mubr.f32.mxu0 0.0
      %1248 = vmatmul.mubr.f32.gmra.mxu0 %v776
      %v1249 = vpop.f32.mrf.mxu0
      %v1250 = vadd.f32 0.0, %v1249
      %v1251 = vpop.f32.mrf.mxu0
      %1252 = vmatprep.mubr.f32.mxu0 0.0
      %1253 = vmatmul.mubr.f32.gmra.mxu0 %v779
      %v1254 = vpop.f32.mrf.mxu0
      %v1255 = vadd.f32 0.0, %v1254
      %v1256 = vpop.f32.mrf.mxu0
      %1257 = vmatprep.mubr.f32.mxu0 0.0
      %1258 = vmatmul.mubr.f32.gmra.mxu0 %v782
      %v1259 = vpop.f32.mrf.mxu0
      %v1260 = vadd.f32 0.0, %v1259
      %v1261 = vpop.f32.mrf.mxu0
      %1262 = vmatprep.mubr.f32.mxu0 0.0
      %1263 = vmatmul.mubr.f32.gmra.mxu0 %v961
      %v1264 = vpop.f32.mrf.mxu0
      %v1265 = vadd.f32 0.0, %v1264
      %v1266 = vpop.f32.mrf.mxu0
      %1267 = vmatprep.mubr.f32.mxu0 0.0
      %1268 = vmatmul.mubr.f32.gmra.mxu0 %v964
      %v1269 = vpop.f32.mrf.mxu0
      %v1270 = vadd.f32 0.0, %v1269
      %v1271 = vpop.f32.mrf.mxu0
      %1272 = vmatprep.mubr.f32.mxu0 0.0
      %1273 = vmatmul.mubr.f32.gmra.mxu0 %v1130
      %v1274 = vpop.f32.mrf.mxu0
      %v1275 = vadd.f32 0.0, %v1274
      %v1276 = vpop.f32.mrf.mxu0
      %1277 = vmatprep.mubr.f32.mxu0 0.0
      %1278 = vmatmul.mubr.f32.gmra.mxu0 %v1133
      %v1279 = vpop.f32.mrf.mxu0
      %v1280 = vadd.f32 0.0, %v1279
      %v1281 = vpop.f32.mrf.mxu0
      %1282 = vdwg.mxu0
      %v1283 = vadd.f32 %v1113, %v1205
      %v1284 = vadd.f32 %v1114, %v1210
      %v1285 = vadd.f32 %v1115, %v1215
      %v1286 = vadd.f32 %v1116, %v1220
      %v1287 = vadd.f32 %v1117, %v1225
      %v1288 = vadd.f32 %v1118, %v1230
      %v1289 = vadd.f32 %v1119, %v1235
      %v1290 = vadd.f32 %v1120, %v1240
      %v1291 = vadd.f32 %v1121, %v1245
      %v1292 = vadd.f32 %v1122, %v1250
      %v1293 = vadd.f32 %v1123, %v1255
      %v1294 = vadd.f32 %v1124, %v1260
      %v1295 = vadd.f32 %v1125, %v1265
      %v1296 = vadd.f32 %v1126, %v1270
      %v1297 = vadd.f32 %v1127, %v1275
      %v1298 = vadd.f32 %v1128, %v1280
      %v1299 = vxor.u32 %v1283, 2147483648
      %v1300 = vxor.u32 %v1284, 2147483648
      %v1301 = vxor.u32 %v1285, 2147483648
      %v1302 = vxor.u32 %v1286, 2147483648
      %v1303 = vxor.u32 %v1287, 2147483648
      %v1304 = vxor.u32 %v1288, 2147483648
      %v1305 = vxor.u32 %v1289, 2147483648
      %v1306 = vxor.u32 %v1290, 2147483648
      %v1307 = vxor.u32 %v1291, 2147483648
      %v1308 = vxor.u32 %v1292, 2147483648
      %v1309 = vxor.u32 %v1293, 2147483648
      %v1310 = vxor.u32 %v1294, 2147483648
      %v1311 = vxor.u32 %v1295, 2147483648
      %v1312 = vxor.u32 %v1296, 2147483648
      %v1313 = vxor.u32 %v1297, 2147483648
      %v1314 = vxor.u32 %v1298, 2147483648
      %v1315 = vmul.f32 %v1299, 1.442695
      %v1316 = vpow.pop %v1315
      %v1317 = vmul.f32 %v1300, 1.442695
      %v1318 = vpow.pop %v1317
      %v1319 = vmul.f32 %v1301, 1.442695
      %v1320 = vpow.pop %v1319
      %v1321 = vmul.f32 %v1302, 1.442695
      %v1322 = vpow.pop %v1321
      %v1323 = vmul.f32 %v1303, 1.442695
      %v1324 = vpow.pop %v1323
      %v1325 = vmul.f32 %v1304, 1.442695
      %v1326 = vpow.pop %v1325
      %v1327 = vmul.f32 %v1305, 1.442695
      %v1328 = vpow.pop %v1327
      %v1329 = vmul.f32 %v1306, 1.442695
      %v1330 = vpow.pop %v1329
      %v1331 = vmul.f32 %v1307, 1.442695
      %v1332 = vpow.pop %v1331
      %v1333 = vmul.f32 %v1308, 1.442695
      %v1334 = vpow.pop %v1333
      %v1335 = vmul.f32 %v1309, 1.442695
      %v1336 = vpow.pop %v1335
      %v1337 = vmul.f32 %v1310, 1.442695
      %v1338 = vpow.pop %v1337
      %v1339 = vmul.f32 %v1311, 1.442695
      %v1340 = vpow.pop %v1339
      %v1341 = vmul.f32 %v1312, 1.442695
      %v1342 = vpow.pop %v1341
      %v1343 = vmul.f32 %v1313, 1.442695
      %v1344 = vpow.pop %v1343
      %v1345 = vmul.f32 %v1314, 1.442695
      %v1346 = vpow.pop %v1345
      %v1347 = vadd.f32 %v1316, 1.0
      %v1348 = vadd.f32 %v1318, 1.0
      %v1349 = vadd.f32 %v1320, 1.0
      %v1350 = vadd.f32 %v1322, 1.0
      %v1351 = vadd.f32 %v1324, 1.0
      %v1352 = vadd.f32 %v1326, 1.0
      %v1353 = vadd.f32 %v1328, 1.0
      %v1354 = vadd.f32 %v1330, 1.0
      %v1355 = vadd.f32 %v1332, 1.0
      %v1356 = vadd.f32 %v1334, 1.0
      %v1357 = vadd.f32 %v1336, 1.0
      %v1358 = vadd.f32 %v1338, 1.0
      %v1359 = vadd.f32 %v1340, 1.0
      %v1360 = vadd.f32 %v1342, 1.0
      %v1361 = vadd.f32 %v1344, 1.0
      %v1362 = vadd.f32 %v1346, 1.0
      %v1363 = vrcp.pop %v1347
      %v1364 = vmul.f32 1.0, %v1363
      %v1365 = vrcp.pop %v1348
      %v1366 = vmul.f32 1.0, %v1365
      %v1367 = vrcp.pop %v1349
      %v1368 = vmul.f32 1.0, %v1367
      %v1369 = vrcp.pop %v1350
      %v1370 = vmul.f32 1.0, %v1369
      %v1371 = vrcp.pop %v1351
      %v1372 = vmul.f32 1.0, %v1371
      %v1373 = vrcp.pop %v1352
      %v1374 = vmul.f32 1.0, %v1373
      %v1375 = vrcp.pop %v1353
      %v1376 = vmul.f32 1.0, %v1375
      %v1377 = vrcp.pop %v1354
      %v1378 = vmul.f32 1.0, %v1377
      %v1379 = vrcp.pop %v1355
      %v1380 = vmul.f32 1.0, %v1379
      %v1381 = vrcp.pop %v1356
      %v1382 = vmul.f32 1.0, %v1381
      %v1383 = vrcp.pop %v1357
      %v1384 = vmul.f32 1.0, %v1383
      %v1385 = vrcp.pop %v1358
      %v1386 = vmul.f32 1.0, %v1385
      %v1387 = vrcp.pop %v1359
      %v1388 = vmul.f32 1.0, %v1387
      %v1389 = vrcp.pop %v1360
      %v1390 = vmul.f32 1.0, %v1389
      %v1391 = vrcp.pop %v1361
      %v1392 = vmul.f32 1.0, %v1391
      %v1393 = vrcp.pop %v1362
      %v1394 = vmul.f32 1.0, %v1393
      %v1395 = vmul.f32 %v393, %v1364
      %v1396 = vmul.f32 %v394, %v1366
      %v1397 = vmul.f32 %v395, %v1368
      %v1398 = vmul.f32 %v396, %v1370
      %v1399 = vmul.f32 %v397, %v1372
      %v1400 = vmul.f32 %v398, %v1374
      %v1401 = vmul.f32 %v399, %v1376
      %v1402 = vmul.f32 %v400, %v1378
      %v1403 = vmul.f32 %v401, %v1380
      %v1404 = vmul.f32 %v402, %v1382
      %v1405 = vmul.f32 %v403, %v1384
      %v1406 = vmul.f32 %v404, %v1386
      %v1407 = vmul.f32 %v405, %v1388
      %v1408 = vmul.f32 %v406, %v1390
      %v1409 = vmul.f32 %v407, %v1392
      %v1410 = vmul.f32 %v408, %v1394
      %1411 = vst.msk [vmem:[%s391] sm:$0xff] %vm687, %v1395
      %1412 = vst.msk [vmem:[%s391 + $0x8] sm:$0xff] %vm687, %v1396
      %1413 = vst.msk [vmem:[%s391 + $0x10] sm:$0xff] %vm687, %v1397
      %1414 = vst.msk [vmem:[%s391 + $0x18] sm:$0xff] %vm687, %v1398
      %1415 = vst.msk [vmem:[%s391 + $0x20] sm:$0xff] %vm687, %v1399
      %1416 = vst.msk [vmem:[%s391 + $0x28] sm:$0xff] %vm687, %v1400
      %1417 = vst.msk [vmem:[%s391 + $0x30] sm:$0xff] %vm687, %v1401
      %1418 = vst.msk [vmem:[%s391 + $0x38] sm:$0xff] %vm687, %v1402
      %1419 = vst.msk [vmem:[%s391 + $0x40] sm:$0xff] %vm687, %v1403
      %1420 = vst.msk [vmem:[%s391 + $0x48] sm:$0xff] %vm687, %v1404
      %1421 = vst.msk [vmem:[%s391 + $0x50] sm:$0xff] %vm687, %v1405
      %1422 = vst.msk [vmem:[%s391 + $0x58] sm:$0xff] %vm687, %v1406
      %1423 = vst.msk [vmem:[%s391 + $0x60] sm:$0xff] %vm687, %v1407
      %1424 = vst.msk [vmem:[%s391 + $0x68] sm:$0xff] %vm687, %v1408
      %1425 = vst.msk [vmem:[%s391 + $0x70] sm:$0xff] %vm687, %v1409
      %1426 = vst.msk [vmem:[%s391 + $0x78] sm:$0xff] %vm687, %v1410
      %s1427 = smul.u32 8, %s21
      %p1428 = scmp.lt.s32.totalorder %s20, 1
      %s1429 = scalar_select %p1428, %s20, 1
      %p1430 = scmp.lt.s32.totalorder %s1427, 15
      %s1431 = scalar_select %p1430, %s1427, 15
      %s1432 = smul.addr %s1431, 2
      %s1433 = smul.addr %s1429, 32
      %s1434 = sadd.s32 %s1432, %s1433
      %s1435 = smul.addr %s1434, 8
      %s1436 = scalar_lea.vmem %s5, %s1435
      // Predicated region
      $region41: #{_ea_nhwc_impl.1} parent=39 // pred_check
        %p1437 = pneg %p190
      $region42: #{_ea_nhwc_impl.1} parent=39 // pred_check_branch
        %1439 = sbr.rel (%p1437) target = $region44
      $region43: #{_ea_nhwc_impl.1} parent=39 // pred_region
        %s1440 = smul.u32 8, %s21
      $region44: #{_ea_nhwc_impl.1} parent=39 // pred_fallthru
        _
    $region40: #{_ea_nhwc_impl.1} parent=5 // pred_fallthru
      _
    %p1441 = scmp.le.s32.totalorder 2, %s11
    // Predicated region
    $region45: #{_ea_nhwc_impl.1} parent=5 // pred_check
      %p1442 = pneg %p1441
    $region46: #{_ea_nhwc_impl.1} parent=5 // pred_check_branch
      %1444 = sbr.rel (%p1442) target = $region48
    $region47: #{_ea_nhwc_impl.1} parent=5 // pred_region
      %s1445 = ssub.s32 %s11, 2
      // Predicated region
      $region49: #{_ea_nhwc_impl.1} parent=47 // pred_check
        %p1446 = pneg %p196
      $region50: #{_ea_nhwc_impl.1} parent=47 // pred_check_branch
        %1448 = sbr.rel (%p1446) target = $region52
      $region51: #{_ea_nhwc_impl.1} parent=47 // pred_region
        %s1449 = smul.u32 8, %s23
        %p1450 = scmp.lt.s32.totalorder %s22, 1
        %s1451 = scalar_select %p1450, %s22, 1
        %p1452 = scmp.lt.s32.totalorder %s1449, 15
        %s1453 = scalar_select %p1452, %s1449, 15
        %s1454 = smul.addr %s1453, 2
        %s1455 = smul.addr %s1451, 32
        %s1456 = sadd.s32 %s1454, %s1455
        %s1457 = smul.addr %s1456, 8
        %s1458 = scalar_lea.vmem %s5, %s1457
      $region52: #{_ea_nhwc_impl.1} parent=47 // pred_fallthru
        _
    $region48: #{_ea_nhwc_impl.1} parent=5 // pred_fallthru
      _
  $region6: #{_ea_nhwc_impl.1} parent=0 // loop_footer
    %s15 = sadd.s32 1, %s11
  $region7: #{_ea_nhwc_impl.1} parent=0 // loop_footer_branch
    %10 = sbr.rel target = $region3
  $region8: #{_ea_nhwc_impl.1} parent=0 // loop_exit
    _

</llo_original>
